<compile_context>
chip_gen: v7x
topology: tpu7x:2x2x1
jax: 0.10.0
libtpu: 0.0.40
codegen_flags: <defaults>
</compile_context>

<pallas_src>
import functools

import jax
import jax.numpy as jnp
from jax import lax
from jax.experimental import pallas as pl
from jax.experimental.pallas import tpu as pltpu


# ----------------------------- helpers ----------------------------------------

def _round_up(n, m):
    return ((n + m - 1) // m) * m


def _cdiv(a, b):
    return -(-a // b)


def _sig(x):
    # sigmoid(x) = 0.5 * tanh(0.5 * x) + 0.5   (one EUP tanh + one VPU FMA)
    return 0.5 * jnp.tanh(0.5 * x) + 0.5


def _num_tensorcores():
    """Best-effort detection of TensorCores per chip (v7x has 2)."""
    try:
        kind = str(getattr(jax.devices()[0], "device_kind", "")).lower()
        if "v7" in kind or "7x" in kind:
            return 2
    except Exception:
        pass
    return 1


def _select_batch_tiling(B, num_tc):
    Bp8 = _round_up(B, 8)
    want_tc_tiles = num_tc if (num_tc >= 2 and Bp8 >= 8 * num_tc) else 1
    min_tiles = max(want_tc_tiles, _cdiv(Bp8, 128))
    btile = min(_round_up(_cdiv(Bp8, min_tiles), 8), 128)
    Bp = _round_up(Bp8, btile)
    return Bp, btile


def _select_t_chunk(T, btile, E, H, budget_bytes):
    # Per-timestep VMEM cost of the streamed/derived time axis:
    #   x chunk, bf16, double-buffered by BlockSpec + f32 gx scratch (single buffer).
    per_step = 2 * btile * E * 2 + btile * 4 * H * 4
    cap = max(1, min(budget_bytes // per_step, 256))
    t_chunk = min(T, cap)
    Tp = _round_up(T, t_chunk)
    return t_chunk, Tp


def _vmem_limit_bytes(t_chunk, btile, E, H, Cp):
    bytes_x = 2 * t_chunk * btile * E * 2                      # streamed x, double-buffered
    bytes_gx = t_chunk * btile * 4 * H * 4                     # f32 gx scratch
    bytes_w = 2 * (2 * E * 4 * H * 2 + H * 4 * H * 2 + 2 * H * Cp * 2)   # wif+wib, whf, wc
    bytes_b = 2 * (2 * 4 * H * 4 + Cp * 4)                     # bf, bb, bc
    bytes_xl = 2 * btile * E * 2                               # x_last
    bytes_state = btile * H * (2 + 4)                          # h (bf16) + c (f32) scratch
    bytes_out = 2 * btile * Cp * 4
    total = (bytes_x + bytes_gx + bytes_w + bytes_b + bytes_xl + bytes_state + bytes_out)
    return int(min(max(total + (2 << 20), 8 << 20), 48 << 20))


# ----------------------------- Pallas kernel ----------------------------------

def lstm_classifier_kernel(x_ref,      # (Tc, Bt, E)  bf16  streamed time-major embedded inputs
                           xlast_ref,  # (Bt, E)      bf16  embedded last token (backward dir)
                           wif_ref,    # (E, 4H)      bf16  forward W_ih^T (resident)
                           bf_ref,     # (1, 4H)      f32   forward bias (b_ih + b_hh)
                           whf_ref,    # (H, 4H)      bf16  forward W_hh^T (resident)
                           wib_ref,    # (E, 4H)      bf16  backward W_ih^T (resident)
                           bb_ref,     # (1, 4H)      f32   backward bias
                           wc_ref,     # (2H, Cp)     bf16  classifier weight^T (lane-padded)
                           bc_ref,     # (1, Cp)      f32   classifier bias (lane-padded)
                           out_ref,    # (Bt, Cp)     f32   logits (lane-dense block)
                           gx_scr,     # VMEM (Tc, Bt, 4H) f32  per-chunk gate preactivations
                           h_scr,      # VMEM (Bt, H)  bf16  hidden carried across chunks
                           c_scr,      # VMEM (Bt, H)  f32   cell carried across chunks
                           *, pad_front, unroll):
    t_idx = pl.program_id(1)
    n_t = pl.num_programs(1)
    Tc, Bt, E = x_ref.shape
    H = whf_ref.shape[0]

    # zero-init the recurrent state at the first time chunk of each batch tile
    @pl.when(t_idx == 0)
    def _():
        h_scr[...] = jnp.zeros_like(h_scr)
        c_scr[...] = jnp.zeros_like(c_scr)

    # Fused input projection for this chunk: one MXU-shaped matmul off the serial path,
    # bias folded in.  bf16 inputs, f32 accumulation.
    x2d = x_ref[...].reshape(Tc * Bt, E)
    gx = jnp.dot(x2d, wif_ref[...], preferred_element_type=jnp.float32) + bf_ref[...]
    gx_scr[...] = gx.reshape(Tc, Bt, 4 * H)

    if pad_front > 0:
        # Front padding lives only in chunk 0.  Zero gate preactivations => g = tanh(0) = 0,
        # so c = f*0 + i*0 = 0 and h = o*tanh(0) = 0: the padding is exactly state-preserving.
        @pl.when(t_idx == 0)
        def _():
            gx_scr[0:pad_front] = jnp.zeros((pad_front, Bt, 4 * H), jnp.float32)

    def step(t, carry):
        h, c = carry                                 # h: bf16 (halves carry vregs), c: f32
        # Only the recurrent matmul sits on the serial path; W_hh is read from VMEM each step
        # (not pinned in vregs across the unrolled loop).
        gates = gx_scr[t] + jnp.dot(h, whf_ref[...], preferred_element_type=jnp.float32)
        i = _sig(gates[:, 0 * H:1 * H])              # lane-aligned slices (H == 128)
        f = _sig(gates[:, 1 * H:2 * H])
        g = jnp.tanh(gates[:, 2 * H:3 * H])
        o = _sig(gates[:, 3 * H:4 * H])
        c = f * c + i * g
        h = (o * jnp.tanh(c)).astype(jnp.bfloat16)
        return h, c

    # h/c stay in vregs across the recurrence; scratch is touched once per chunk.
    h, c = lax.fori_loop(0, Tc, step, (h_scr[...], c_scr[...]), unroll=unroll)
    h_scr[...] = h
    c_scr[...] = c

    @pl.when(t_idx == n_t - 1)
    def _():
        # Backward direction at the last timestep: one cell step from zero state on x[T-1]
        # (W_hh term and forget-gate contribution vanish because h0 = c0 = 0).
        gb = (jnp.dot(xlast_ref[...], wib_ref[...], preferred_element_type=jnp.float32)
              + bb_ref[...])
        ib = _sig(gb[:, 0 * H:1 * H])
        gg = jnp.tanh(gb[:, 2 * H:3 * H])
        ob = _sig(gb[:, 3 * H:4 * H])
        h_bwd = (ob * jnp.tanh(ib * gg)).astype(jnp.bfloat16)          # (Bt, H)

        # classifier over concat([h_fwd, h_bwd]) as a split matmul (avoids a lane concat);
        # output block is lane-dense (Cp = 128).
        wc = wc_ref[...]
        out_ref[...] = (
            jnp.dot(h, wc[0:H, :], preferred_element_type=jnp.float32)
            + jnp.dot(h_bwd, wc[H:2 * H, :], preferred_element_type=jnp.float32)
            + bc_ref[...])


# ------------------------------ wrapper ----------------------------------------

def lstm_classifier(input_ids, params, *,
                    stream_budget_bytes=20 * 1024 * 1024,
                    num_tensorcores=None):
    emb = params["embedding"]                      # (V, E)
    B, T = input_ids.shape
    E = emb.shape[1]
    H = params["whf"].shape[0]
    C = params["wc"].shape[1]
    bf16 = jnp.bfloat16

    if num_tensorcores is None:
        num_tensorcores = _num_tensorcores()

    # ---- glue (XLA): embedding gather directly into time-major bf16 layout -----------------
    x_tm = jnp.take(emb, input_ids.T, axis=0).astype(bf16)    # (T, B, E)
    x_last = x_tm[T - 1]                                      # (B, E) - backward dir input

    # ---- batch tiling (>= 2 tiles on v7x when B >= 16, widest tile otherwise) ---------------
    Bp, btile = _select_batch_tiling(B, num_tensorcores)

    # ---- time chunking from a VMEM budget; front-pad to a multiple of t_chunk ---------------
    t_chunk, Tp = _select_t_chunk(T, btile, E, H, stream_budget_bytes)
    pad_front = Tp - T

    if pad_front or Bp != B:
        x_tm = jnp.pad(x_tm, ((pad_front, 0), (0, Bp - B), (0, 0)))
        x_last = jnp.pad(x_last, ((0, Bp - B), (0, 0)))

    # ---- lane-dense classifier output: pad C to 128 lanes, slice after ----------------------
    Cp = max(128, _round_up(C, 128))
    wc = jnp.pad(params["wc"], ((0, 0), (0, Cp - C))).astype(bf16)     # (2H, Cp)
    bc = jnp.pad(params["bc"], ((0, 0), (0, Cp - C)))                  # (1, Cp) f32

    wif = params["wif"].astype(bf16)
    whf = params["whf"].astype(bf16)
    wib = params["wib"].astype(bf16)
    bf = params["bf"]
    bb = params["bb"]

    unroll = True if t_chunk <= 16 else 8
    grid = (Bp // btile, Tp // t_chunk)            # (batch tiles, time chunks)
    vmem_limit = _vmem_limit_bytes(t_chunk, btile, E, H, Cp)

    kernel = functools.partial(lstm_classifier_kernel, pad_front=pad_front, unroll=unroll)

    out = pl.pallas_call(
        kernel,
        out_shape=jax.ShapeDtypeStruct((Bp, Cp), jnp.float32),
        grid_spec=pltpu.PrefetchScalarGridSpec(
            num_scalar_prefetch=0,
            grid=grid,
            in_specs=[
                pl.BlockSpec((t_chunk, btile, E), lambda b, t: (t, b, 0)),   # x (streamed)
                pl.BlockSpec((btile, E), lambda b, t: (b, 0)),               # x_last
                pl.BlockSpec((E, 4 * H), lambda b, t: (0, 0)),               # wif (resident)
                pl.BlockSpec((1, 4 * H), lambda b, t: (0, 0)),               # bf
                pl.BlockSpec((H, 4 * H), lambda b, t: (0, 0)),               # whf (resident)
                pl.BlockSpec((E, 4 * H), lambda b, t: (0, 0)),               # wib (resident)
                pl.BlockSpec((1, 4 * H), lambda b, t: (0, 0)),               # bb
                pl.BlockSpec((2 * H, Cp), lambda b, t: (0, 0)),              # wc (resident)
                pl.BlockSpec((1, Cp), lambda b, t: (0, 0)),                  # bc
            ],
            out_specs=pl.BlockSpec((btile, Cp), lambda b, t: (b, 0)),
            scratch_shapes=[
                pltpu.VMEM((t_chunk, btile, 4 * H), jnp.float32),            # gx chunk
                pltpu.VMEM((btile, H), jnp.bfloat16),                        # h carry (bf16)
                pltpu.VMEM((btile, H), jnp.float32),                         # c carry (f32)
            ],
        ),
        compiler_params=pltpu.CompilerParams(
            dimension_semantics=("parallel", "arbitrary"),                   # batch ||, time seq
            vmem_limit_bytes=vmem_limit),
    )(x_tm, x_last, wif, bf, whf, wib, bb, wc, bc)
    return out[:B, :C]


# --------------------------- parameter init ------------------------------------

def init_params(key, vocab_size, emb_dim, hidden_dim, num_classes, pad_id=0):
    ks = jax.random.split(key, 12)
    bound = 1.0 / jnp.sqrt(hidden_dim)

    def u(k, shape):
        return jax.random.uniform(k, shape, jnp.float32, -bound, bound)

    emb = 0.02 * jax.random.normal(ks[0], (vocab_size, emb_dim), jnp.float32)
    emb = emb.at[pad_id].set(0.0)                  # padding_idx row is zero

    params = dict(
        embedding=emb,
        # forward direction (stored transposed: x @ W form), gate order (i, f, g, o)
        wif=u(ks[1], (emb_dim, 4 * hidden_dim)),
        whf=u(ks[2], (hidden_dim, 4 * hidden_dim)),
        bf=(u(ks[3], (1, 4 * hidden_dim)) + u(ks[4], (1, 4 * hidden_dim))),
        # backward direction
        wib=u(ks[5], (emb_dim, 4 * hidden_dim)),
        whb=u(ks[6], (hidden_dim, 4 * hidden_dim)),   # unused by kernel (h0=0 shortcut), used by ref
        bb=(u(ks[7], (1, 4 * hidden_dim)) + u(ks[8], (1, 4 * hidden_dim))),
        # classifier (Linear(2H, C)), stored transposed
        wc=u(ks[9], (2 * hidden_dim, num_classes)),
        bc=u(ks[10], (1, num_classes)),
    )
    return params


# ------------------------- pure-JAX reference -----------------------------------

def reference_forward(input_ids, params):
    """Full f32 bidirectional LSTM reference (runs the complete backward scan)."""
    x = params["embedding"][input_ids]             # (B, T, E)
    B, T, E = x.shape
    H = params["whf"].shape[0]

    def cell(h, c, x_t, wi, wh, b):
        gates = x_t @ wi + h @ wh + b
        i = jax.nn.sigmoid(gates[:, 0:H])
        f = jax.nn.sigmoid(gates[:, H:2 * H])
        g = jnp.tanh(gates[:, 2 * H:3 * H])
        o = jax.nn.sigmoid(gates[:, 3 * H:4 * H])
        c_new = f * c + i * g
        return o * jnp.tanh(c_new), c_new

    # forward scan
    h = jnp.zeros((B, H), jnp.float32)
    c = jnp.zeros((B, H), jnp.float32)
    for t in range(T):
        h, c = cell(h, c, x[:, t], params["wif"], params["whf"], params["bf"])
    h_fwd_last = h

    # backward scan, collect outputs aligned to time index
    h = jnp.zeros((B, H), jnp.float32)
    c = jnp.zeros((B, H), jnp.float32)
    bwd_outs = [None] * T
    for t in range(T - 1, -1, -1):
        h, c = cell(h, c, x[:, t], params["wib"], params["whb"], params["bb"])
        bwd_outs[t] = h
    h_bwd_at_last = bwd_outs[T - 1]

    feat = jnp.concatenate([h_fwd_last, h_bwd_at_last], axis=-1)   # (B, 2H)
    return feat @ params["wc"] + params["bc"]


# --------------------------------- main ------------------------------------------

if __name__ == "__main__":
    # module defaults: emb_dim=128, hidden_dim=128 (H=128 keeps gate slices lane-aligned)
    VOCAB, EMB, HID, CLASSES = 64, 128, 128, 2
    B, T = 2, 8

    key = jax.random.PRNGKey(0)
    k_param, k_ids = jax.random.split(key)
    params = init_params(k_param, VOCAB, EMB, HID, CLASSES, pad_id=0)
    input_ids = jax.random.randint(k_ids, (B, T), 0, VOCAB, dtype=jnp.int32)

    logits = jax.block_until_ready(lstm_classifier(input_ids, params))
    ref = reference_forward(input_ids, params)

    assert logits.shape == (B, CLASSES)
    # bf16 MXU inputs / bf16 h-carry (f32 accumulation & elementwise) vs. pure-f32 reference.
    # NOTE: the bf16 h rounding compounds over timesteps; re-validate at the production T.
    assert jnp.allclose(logits, ref, rtol=2e-2, atol=2e-2), (logits, ref)
    print("KERNEL_OK")
</pallas_src>

<mosaic_0001>
module attributes {stable_mosaic.version = 11 : i64} {
  func.func @lstm_classifier_kernel(%arg0: i32, %arg1: i32, %arg2: memref<8x8x128xbf16, #tpu.memory_space<vmem>>, %arg3: memref<8x128xbf16, #tpu.memory_space<vmem>>, %arg4: memref<128x512xbf16, #tpu.memory_space<vmem>>, %arg5: memref<1x512xf32, #tpu.memory_space<vmem>>, %arg6: memref<128x512xbf16, #tpu.memory_space<vmem>>, %arg7: memref<128x512xbf16, #tpu.memory_space<vmem>>, %arg8: memref<1x512xf32, #tpu.memory_space<vmem>>, %arg9: memref<256x128xbf16, #tpu.memory_space<vmem>>, %arg10: memref<1x128xf32, #tpu.memory_space<vmem>>, %arg11: memref<8x128xf32, #tpu.memory_space<vmem>>, %arg12: memref<8x8x512xf32, #tpu.memory_space<vmem>>, %arg13: memref<8x128xbf16, #tpu.memory_space<vmem>>, %arg14: memref<8x128xf32, #tpu.memory_space<vmem>>) attributes {dimension_semantics = [#tpu.dimension_semantics<parallel>, #tpu.dimension_semantics<arbitrary>], iteration_bounds = array<i64: 1, 1>, scalar_prefetch = 0 : i64, scratch_operands = 3 : i64, tpu.core_type = #tpu.core_type<tc>, window_params = [{transform_indices = @transform_0, window_bounds = array<i64: 8, 8, 128>}, {transform_indices = @transform_1, window_bounds = array<i64: 8, 128>}, {pipeline_mode = #tpu.pipeline_mode<synchronous>, transform_indices = @transform_2, window_bounds = array<i64: 128, 512>}, {pipeline_mode = #tpu.pipeline_mode<synchronous>, transform_indices = @transform_3, window_bounds = array<i64: 1, 512>}, {pipeline_mode = #tpu.pipeline_mode<synchronous>, transform_indices = @transform_4, window_bounds = array<i64: 128, 512>}, {pipeline_mode = #tpu.pipeline_mode<synchronous>, transform_indices = @transform_5, window_bounds = array<i64: 128, 512>}, {pipeline_mode = #tpu.pipeline_mode<synchronous>, transform_indices = @transform_6, window_bounds = array<i64: 1, 512>}, {pipeline_mode = #tpu.pipeline_mode<synchronous>, transform_indices = @transform_7, window_bounds = array<i64: 256, 128>}, {pipeline_mode = #tpu.pipeline_mode<synchronous>, transform_indices = @transform_8, window_bounds = array<i64: 1, 128>}, {transform_indices = @transform_9, window_bounds = array<i64: 8, 128>}]} {
    %c0_i32 = arith.constant 0 : i32
    %0 = arith.cmpi eq, %arg1, %c0_i32 : i32
    %1 = arith.extui %0 : i1 to i32
    %c0_i32_0 = arith.constant 0 : i32
    %2 = arith.cmpi ne, %1, %c0_i32_0 : i32
    scf.if %2 {
      %cst_133 = arith.constant 0.000000e+00 : bf16
      %323 = vector.broadcast %cst_133 : bf16 to vector<8x128xbf16>
      %c0_134 = arith.constant 0 : index
      %c0_135 = arith.constant 0 : index
      %324 = vector.load %arg13[%c0_134, %c0_135] : memref<8x128xbf16, #tpu.memory_space<vmem>>, vector<8x128xbf16>
      tpu.vector_store %arg13[%c0_134, %c0_135], %323 {strides = array<i32>} : memref<8x128xbf16, #tpu.memory_space<vmem>>, vector<8x128xbf16>,
      %cst_136 = arith.constant 0.000000e+00 : f32
      %325 = vector.broadcast %cst_136 : f32 to vector<8x128xf32>
      %c0_137 = arith.constant 0 : index
      %c0_138 = arith.constant 0 : index
      %326 = vector.load %arg14[%c0_137, %c0_138] : memref<8x128xf32, #tpu.memory_space<vmem>>, vector<8x128xf32>
      tpu.vector_store %arg14[%c0_137, %c0_138], %325 {strides = array<i32>} : memref<8x128xf32, #tpu.memory_space<vmem>>, vector<8x128xf32>,
    } else {
    }
    %c0 = arith.constant 0 : index
    %c0_1 = arith.constant 0 : index
    %c0_2 = arith.constant 0 : index
    %3 = vector.load %arg2[%c0, %c0_1, %c0_2] : memref<8x8x128xbf16, #tpu.memory_space<vmem>>, vector<8x8x128xbf16>
    %4 = vector.shape_cast %3 : vector<8x8x128xbf16> to vector<64x128xbf16>
    %c0_3 = arith.constant 0 : index
    %c0_4 = arith.constant 0 : index
    %5 = vector.load %arg4[%c0_3, %c0_4] : memref<128x512xbf16, #tpu.memory_space<vmem>>, vector<128x512xbf16>
    %cst = arith.constant dense<0.000000e+00> : vector<64x512xf32>
    %6 = tpu.matmul %4, %5, %cst {dimension_numbers = #tpu.dot_dimension_numbers<[1], [0], [0], [1], [0, 0, 1, 1], [], []>} : vector<64x128xbf16>, vector<128x512xbf16>, vector<64x512xf32> -> vector<64x512xf32>
    %c0_5 = arith.constant 0 : index
    %c0_6 = arith.constant 0 : index
    %7 = vector.load %arg5[%c0_5, %c0_6] : memref<1x512xf32, #tpu.memory_space<vmem>>, vector<1x512xf32>
    %8 = vector.broadcast %7 : vector<1x512xf32> to vector<64x512xf32>
    %9 = arith.addf %6, %8 : vector<64x512xf32>
    %10 = vector.shape_cast %9 : vector<64x512xf32> to vector<8x8x512xf32>
    %c0_7 = arith.constant 0 : index
    %c0_8 = arith.constant 0 : index
    %c0_9 = arith.constant 0 : index
    %11 = vector.load %arg12[%c0_7, %c0_8, %c0_9] : memref<8x8x512xf32, #tpu.memory_space<vmem>>, vector<8x8x512xf32>
    tpu.vector_store %arg12[%c0_7, %c0_8, %c0_9], %10 {strides = array<i32>} : memref<8x8x512xf32, #tpu.memory_space<vmem>>, vector<8x8x512xf32>,
    %c0_10 = arith.constant 0 : index
    %c0_11 = arith.constant 0 : index
    %12 = vector.load %arg13[%c0_10, %c0_11] : memref<8x128xbf16, #tpu.memory_space<vmem>>, vector<8x128xbf16>
    %c0_12 = arith.constant 0 : index
    %c0_13 = arith.constant 0 : index
    %13 = vector.load %arg14[%c0_12, %c0_13] : memref<8x128xf32, #tpu.memory_space<vmem>>, vector<8x128xf32>
    %c0_i32_14 = arith.constant 0 : i32
    %14 = arith.index_cast %c0_i32_14 : i32 to index
    %c0_15 = arith.constant 0 : index
    %c0_16 = arith.constant 0 : index
    %15 = vector.load %arg12[%14, %c0_15, %c0_16] : memref<8x8x512xf32, #tpu.memory_space<vmem>>, vector<1x8x512xf32>
    %16 = vector.shape_cast %15 : vector<1x8x512xf32> to vector<8x512xf32>
    %c0_17 = arith.constant 0 : index
    %c0_18 = arith.constant 0 : index
    %17 = vector.load %arg6[%c0_17, %c0_18] : memref<128x512xbf16, #tpu.memory_space<vmem>>, vector<128x512xbf16>
    %cst_19 = arith.constant dense<0.000000e+00> : vector<8x512xf32>
    %18 = tpu.matmul %12, %17, %cst_19 {dimension_numbers = #tpu.dot_dimension_numbers<[1], [0], [0], [1], [0, 0, 1, 1], [], []>} : vector<8x128xbf16>, vector<128x512xbf16>, vector<8x512xf32> -> vector<8x512xf32>
    %19 = arith.addf %16, %18 : vector<8x512xf32>
    %20 = vector.extract_strided_slice %19 {offsets = [0, 0], sizes = [8, 128], strides = [1, 1]} : vector<8x512xf32> to vector<8x128xf32>
    %cst_20 = arith.constant 5.000000e-01 : f32
    %21 = vector.broadcast %cst_20 : f32 to vector<8x128xf32>
    %22 = arith.mulf %21, %20 : vector<8x128xf32>
    %23 = math.tanh %22 : vector<8x128xf32>
    %cst_21 = arith.constant 5.000000e-01 : f32
    %24 = vector.broadcast %cst_21 : f32 to vector<8x128xf32>
    %25 = arith.mulf %24, %23 : vector<8x128xf32>
    %cst_22 = arith.constant 5.000000e-01 : f32
    %26 = vector.broadcast %cst_22 : f32 to vector<8x128xf32>
    %27 = arith.addf %25, %26 : vector<8x128xf32>
    %28 = vector.extract_strided_slice %19 {offsets = [0, 128], sizes = [8, 128], strides = [1, 1]} : vector<8x512xf32> to vector<8x128xf32>
    %cst_23 = arith.constant 5.000000e-01 : f32
    %29 = vector.broadcast %cst_23 : f32 to vector<8x128xf32>
    %30 = arith.mulf %29, %28 : vector<8x128xf32>
    %31 = math.tanh %30 : vector<8x128xf32>
    %cst_24 = arith.constant 5.000000e-01 : f32
    %32 = vector.broadcast %cst_24 : f32 to vector<8x128xf32>
    %33 = arith.mulf %32, %31 : vector<8x128xf32>
    %cst_25 = arith.constant 5.000000e-01 : f32
    %34 = vector.broadcast %cst_25 : f32 to vector<8x128xf32>
    %35 = arith.addf %33, %34 : vector<8x128xf32>
    %36 = vector.extract_strided_slice %19 {offsets = [0, 256], sizes = [8, 128], strides = [1, 1]} : vector<8x512xf32> to vector<8x128xf32>
    %37 = math.tanh %36 : vector<8x128xf32>
    %38 = vector.extract_strided_slice %19 {offsets = [0, 384], sizes = [8, 128], strides = [1, 1]} : vector<8x512xf32> to vector<8x128xf32>
    %cst_26 = arith.constant 5.000000e-01 : f32
    %39 = vector.broadcast %cst_26 : f32 to vector<8x128xf32>
    %40 = arith.mulf %39, %38 : vector<8x128xf32>
    %41 = math.tanh %40 : vector<8x128xf32>
    %cst_27 = arith.constant 5.000000e-01 : f32
    %42 = vector.broadcast %cst_27 : f32 to vector<8x128xf32>
    %43 = arith.mulf %42, %41 : vector<8x128xf32>
    %cst_28 = arith.constant 5.000000e-01 : f32
    %44 = vector.broadcast %cst_28 : f32 to vector<8x128xf32>
    %45 = arith.addf %43, %44 : vector<8x128xf32>
    %46 = arith.mulf %35, %13 : vector<8x128xf32>
    %47 = arith.mulf %27, %37 : vector<8x128xf32>
    %48 = arith.addf %46, %47 : vector<8x128xf32>
    %49 = math.tanh %48 : vector<8x128xf32>
    %50 = arith.mulf %45, %49 : vector<8x128xf32>
    %51 = arith.truncf %50 : vector<8x128xf32> to vector<8x128xbf16>
    %c1_i32 = arith.constant 1 : i32
    %52 = arith.index_cast %c1_i32 : i32 to index
    %c0_29 = arith.constant 0 : index
    %c0_30 = arith.constant 0 : index
    %53 = vector.load %arg12[%52, %c0_29, %c0_30] : memref<8x8x512xf32, #tpu.memory_space<vmem>>, vector<1x8x512xf32>
    %54 = vector.shape_cast %53 : vector<1x8x512xf32> to vector<8x512xf32>
    %c0_31 = arith.constant 0 : index
    %c0_32 = arith.constant 0 : index
    %55 = vector.load %arg6[%c0_31, %c0_32] : memref<128x512xbf16, #tpu.memory_space<vmem>>, vector<128x512xbf16>
    %cst_33 = arith.constant dense<0.000000e+00> : vector<8x512xf32>
    %56 = tpu.matmul %51, %55, %cst_33 {dimension_numbers = #tpu.dot_dimension_numbers<[1], [0], [0], [1], [0, 0, 1, 1], [], []>} : vector<8x128xbf16>, vector<128x512xbf16>, vector<8x512xf32> -> vector<8x512xf32>
    %57 = arith.addf %54, %56 : vector<8x512xf32>
    %58 = vector.extract_strided_slice %57 {offsets = [0, 0], sizes = [8, 128], strides = [1, 1]} : vector<8x512xf32> to vector<8x128xf32>
    %cst_34 = arith.constant 5.000000e-01 : f32
    %59 = vector.broadcast %cst_34 : f32 to vector<8x128xf32>
    %60 = arith.mulf %59, %58 : vector<8x128xf32>
    %61 = math.tanh %60 : vector<8x128xf32>
    %cst_35 = arith.constant 5.000000e-01 : f32
    %62 = vector.broadcast %cst_35 : f32 to vector<8x128xf32>
    %63 = arith.mulf %62, %61 : vector<8x128xf32>
    %cst_36 = arith.constant 5.000000e-01 : f32
    %64 = vector.broadcast %cst_36 : f32 to vector<8x128xf32>
    %65 = arith.addf %63, %64 : vector<8x128xf32>
    %66 = vector.extract_strided_slice %57 {offsets = [0, 128], sizes = [8, 128], strides = [1, 1]} : vector<8x512xf32> to vector<8x128xf32>
    %cst_37 = arith.constant 5.000000e-01 : f32
    %67 = vector.broadcast %cst_37 : f32 to vector<8x128xf32>
    %68 = arith.mulf %67, %66 : vector<8x128xf32>
    %69 = math.tanh %68 : vector<8x128xf32>
    %cst_38 = arith.constant 5.000000e-01 : f32
    %70 = vector.broadcast %cst_38 : f32 to vector<8x128xf32>
    %71 = arith.mulf %70, %69 : vector<8x128xf32>
    %cst_39 = arith.constant 5.000000e-01 : f32
    %72 = vector.broadcast %cst_39 : f32 to vector<8x128xf32>
    %73 = arith.addf %71, %72 : vector<8x128xf32>
    %74 = vector.extract_strided_slice %57 {offsets = [0, 256], sizes = [8, 128], strides = [1, 1]} : vector<8x512xf32> to vector<8x128xf32>
    %75 = math.tanh %74 : vector<8x128xf32>
    %76 = vector.extract_strided_slice %57 {offsets = [0, 384], sizes = [8, 128], strides = [1, 1]} : vector<8x512xf32> to vector<8x128xf32>
    %cst_40 = arith.constant 5.000000e-01 : f32
    %77 = vector.broadcast %cst_40 : f32 to vector<8x128xf32>
    %78 = arith.mulf %77, %76 : vector<8x128xf32>
    %79 = math.tanh %78 : vector<8x128xf32>
    %cst_41 = arith.constant 5.000000e-01 : f32
    %80 = vector.broadcast %cst_41 : f32 to vector<8x128xf32>
    %81 = arith.mulf %80, %79 : vector<8x128xf32>
    %cst_42 = arith.constant 5.000000e-01 : f32
    %82 = vector.broadcast %cst_42 : f32 to vector<8x128xf32>
    %83 = arith.addf %81, %82 : vector<8x128xf32>
    %84 = arith.mulf %73, %48 : vector<8x128xf32>
    %85 = arith.mulf %65, %75 : vector<8x128xf32>
    %86 = arith.addf %84, %85 : vector<8x128xf32>
    %87 = math.tanh %86 : vector<8x128xf32>
    %88 = arith.mulf %83, %87 : vector<8x128xf32>
    %89 = arith.truncf %88 : vector<8x128xf32> to vector<8x128xbf16>
    %c2_i32 = arith.constant 2 : i32
    %90 = arith.index_cast %c2_i32 : i32 to index
    %c0_43 = arith.constant 0 : index
    %c0_44 = arith.constant 0 : index
    %91 = vector.load %arg12[%90, %c0_43, %c0_44] : memref<8x8x512xf32, #tpu.memory_space<vmem>>, vector<1x8x512xf32>
    %92 = vector.shape_cast %91 : vector<1x8x512xf32> to vector<8x512xf32>
    %c0_45 = arith.constant 0 : index
    %c0_46 = arith.constant 0 : index
    %93 = vector.load %arg6[%c0_45, %c0_46] : memref<128x512xbf16, #tpu.memory_space<vmem>>, vector<128x512xbf16>
    %cst_47 = arith.constant dense<0.000000e+00> : vector<8x512xf32>
    %94 = tpu.matmul %89, %93, %cst_47 {dimension_numbers = #tpu.dot_dimension_numbers<[1], [0], [0], [1], [0, 0, 1, 1], [], []>} : vector<8x128xbf16>, vector<128x512xbf16>, vector<8x512xf32> -> vector<8x512xf32>
    %95 = arith.addf %92, %94 : vector<8x512xf32>
    %96 = vector.extract_strided_slice %95 {offsets = [0, 0], sizes = [8, 128], strides = [1, 1]} : vector<8x512xf32> to vector<8x128xf32>
    %cst_48 = arith.constant 5.000000e-01 : f32
    %97 = vector.broadcast %cst_48 : f32 to vector<8x128xf32>
    %98 = arith.mulf %97, %96 : vector<8x128xf32>
    %99 = math.tanh %98 : vector<8x128xf32>
    %cst_49 = arith.constant 5.000000e-01 : f32
    %100 = vector.broadcast %cst_49 : f32 to vector<8x128xf32>
    %101 = arith.mulf %100, %99 : vector<8x128xf32>
    %cst_50 = arith.constant 5.000000e-01 : f32
    %102 = vector.broadcast %cst_50 : f32 to vector<8x128xf32>
    %103 = arith.addf %101, %102 : vector<8x128xf32>
    %104 = vector.extract_strided_slice %95 {offsets = [0, 128], sizes = [8, 128], strides = [1, 1]} : vector<8x512xf32> to vector<8x128xf32>
    %cst_51 = arith.constant 5.000000e-01 : f32
    %105 = vector.broadcast %cst_51 : f32 to vector<8x128xf32>
    %106 = arith.mulf %105, %104 : vector<8x128xf32>
    %107 = math.tanh %106 : vector<8x128xf32>
    %cst_52 = arith.constant 5.000000e-01 : f32
    %108 = vector.broadcast %cst_52 : f32 to vector<8x128xf32>
    %109 = arith.mulf %108, %107 : vector<8x128xf32>
    %cst_53 = arith.constant 5.000000e-01 : f32
    %110 = vector.broadcast %cst_53 : f32 to vector<8x128xf32>
    %111 = arith.addf %109, %110 : vector<8x128xf32>
    %112 = vector.extract_strided_slice %95 {offsets = [0, 256], sizes = [8, 128], strides = [1, 1]} : vector<8x512xf32> to vector<8x128xf32>
    %113 = math.tanh %112 : vector<8x128xf32>
    %114 = vector.extract_strided_slice %95 {offsets = [0, 384], sizes = [8, 128], strides = [1, 1]} : vector<8x512xf32> to vector<8x128xf32>
    %cst_54 = arith.constant 5.000000e-01 : f32
    %115 = vector.broadcast %cst_54 : f32 to vector<8x128xf32>
    %116 = arith.mulf %115, %114 : vector<8x128xf32>
    %117 = math.tanh %116 : vector<8x128xf32>
    %cst_55 = arith.constant 5.000000e-01 : f32
    %118 = vector.broadcast %cst_55 : f32 to vector<8x128xf32>
    %119 = arith.mulf %118, %117 : vector<8x128xf32>
    %cst_56 = arith.constant 5.000000e-01 : f32
    %120 = vector.broadcast %cst_56 : f32 to vector<8x128xf32>
    %121 = arith.addf %119, %120 : vector<8x128xf32>
    %122 = arith.mulf %111, %86 : vector<8x128xf32>
    %123 = arith.mulf %103, %113 : vector<8x128xf32>
    %124 = arith.addf %122, %123 : vector<8x128xf32>
    %125 = math.tanh %124 : vector<8x128xf32>
    %126 = arith.mulf %121, %125 : vector<8x128xf32>
    %127 = arith.truncf %126 : vector<8x128xf32> to vector<8x128xbf16>
    %c3_i32 = arith.constant 3 : i32
    %128 = arith.index_cast %c3_i32 : i32 to index
    %c0_57 = arith.constant 0 : index
    %c0_58 = arith.constant 0 : index
    %129 = vector.load %arg12[%128, %c0_57, %c0_58] : memref<8x8x512xf32, #tpu.memory_space<vmem>>, vector<1x8x512xf32>
    %130 = vector.shape_cast %129 : vector<1x8x512xf32> to vector<8x512xf32>
    %c0_59 = arith.constant 0 : index
    %c0_60 = arith.constant 0 : index
    %131 = vector.load %arg6[%c0_59, %c0_60] : memref<128x512xbf16, #tpu.memory_space<vmem>>, vector<128x512xbf16>
    %cst_61 = arith.constant dense<0.000000e+00> : vector<8x512xf32>
    %132 = tpu.matmul %127, %131, %cst_61 {dimension_numbers = #tpu.dot_dimension_numbers<[1], [0], [0], [1], [0, 0, 1, 1], [], []>} : vector<8x128xbf16>, vector<128x512xbf16>, vector<8x512xf32> -> vector<8x512xf32>
    %133 = arith.addf %130, %132 : vector<8x512xf32>
    %134 = vector.extract_strided_slice %133 {offsets = [0, 0], sizes = [8, 128], strides = [1, 1]} : vector<8x512xf32> to vector<8x128xf32>
    %cst_62 = arith.constant 5.000000e-01 : f32
    %135 = vector.broadcast %cst_62 : f32 to vector<8x128xf32>
    %136 = arith.mulf %135, %134 : vector<8x128xf32>
    %137 = math.tanh %136 : vector<8x128xf32>
    %cst_63 = arith.constant 5.000000e-01 : f32
    %138 = vector.broadcast %cst_63 : f32 to vector<8x128xf32>
    %139 = arith.mulf %138, %137 : vector<8x128xf32>
    %cst_64 = arith.constant 5.000000e-01 : f32
    %140 = vector.broadcast %cst_64 : f32 to vector<8x128xf32>
    %141 = arith.addf %139, %140 : vector<8x128xf32>
    %142 = vector.extract_strided_slice %133 {offsets = [0, 128], sizes = [8, 128], strides = [1, 1]} : vector<8x512xf32> to vector<8x128xf32>
    %cst_65 = arith.constant 5.000000e-01 : f32
    %143 = vector.broadcast %cst_65 : f32 to vector<8x128xf32>
    %144 = arith.mulf %143, %142 : vector<8x128xf32>
    %145 = math.tanh %144 : vector<8x128xf32>
    %cst_66 = arith.constant 5.000000e-01 : f32
    %146 = vector.broadcast %cst_66 : f32 to vector<8x128xf32>
    %147 = arith.mulf %146, %145 : vector<8x128xf32>
    %cst_67 = arith.constant 5.000000e-01 : f32
    %148 = vector.broadcast %cst_67 : f32 to vector<8x128xf32>
    %149 = arith.addf %147, %148 : vector<8x128xf32>
    %150 = vector.extract_strided_slice %133 {offsets = [0, 256], sizes = [8, 128], strides = [1, 1]} : vector<8x512xf32> to vector<8x128xf32>
    %151 = math.tanh %150 : vector<8x128xf32>
    %152 = vector.extract_strided_slice %133 {offsets = [0, 384], sizes = [8, 128], strides = [1, 1]} : vector<8x512xf32> to vector<8x128xf32>
    %cst_68 = arith.constant 5.000000e-01 : f32
    %153 = vector.broadcast %cst_68 : f32 to vector<8x128xf32>
    %154 = arith.mulf %153, %152 : vector<8x128xf32>
    %155 = math.tanh %154 : vector<8x128xf32>
    %cst_69 = arith.constant 5.000000e-01 : f32
    %156 = vector.broadcast %cst_69 : f32 to vector<8x128xf32>
    %157 = arith.mulf %156, %155 : vector<8x128xf32>
    %cst_70 = arith.constant 5.000000e-01 : f32
    %158 = vector.broadcast %cst_70 : f32 to vector<8x128xf32>
    %159 = arith.addf %157, %158 : vector<8x128xf32>
    %160 = arith.mulf %149, %124 : vector<8x128xf32>
    %161 = arith.mulf %141, %151 : vector<8x128xf32>
    %162 = arith.addf %160, %161 : vector<8x128xf32>
    %163 = math.tanh %162 : vector<8x128xf32>
    %164 = arith.mulf %159, %163 : vector<8x128xf32>
    %165 = arith.truncf %164 : vector<8x128xf32> to vector<8x128xbf16>
    %c4_i32 = arith.constant 4 : i32
    %166 = arith.index_cast %c4_i32 : i32 to index
    %c0_71 = arith.constant 0 : index
    %c0_72 = arith.constant 0 : index
    %167 = vector.load %arg12[%166, %c0_71, %c0_72] : memref<8x8x512xf32, #tpu.memory_space<vmem>>, vector<1x8x512xf32>
    %168 = vector.shape_cast %167 : vector<1x8x512xf32> to vector<8x512xf32>
    %c0_73 = arith.constant 0 : index
    %c0_74 = arith.constant 0 : index
    %169 = vector.load %arg6[%c0_73, %c0_74] : memref<128x512xbf16, #tpu.memory_space<vmem>>, vector<128x512xbf16>
    %cst_75 = arith.constant dense<0.000000e+00> : vector<8x512xf32>
    %170 = tpu.matmul %165, %169, %cst_75 {dimension_numbers = #tpu.dot_dimension_numbers<[1], [0], [0], [1], [0, 0, 1, 1], [], []>} : vector<8x128xbf16>, vector<128x512xbf16>, vector<8x512xf32> -> vector<8x512xf32>
    %171 = arith.addf %168, %170 : vector<8x512xf32>
    %172 = vector.extract_strided_slice %171 {offsets = [0, 0], sizes = [8, 128], strides = [1, 1]} : vector<8x512xf32> to vector<8x128xf32>
    %cst_76 = arith.constant 5.000000e-01 : f32
    %173 = vector.broadcast %cst_76 : f32 to vector<8x128xf32>
    %174 = arith.mulf %173, %172 : vector<8x128xf32>
    %175 = math.tanh %174 : vector<8x128xf32>
    %cst_77 = arith.constant 5.000000e-01 : f32
    %176 = vector.broadcast %cst_77 : f32 to vector<8x128xf32>
    %177 = arith.mulf %176, %175 : vector<8x128xf32>
    %cst_78 = arith.constant 5.000000e-01 : f32
    %178 = vector.broadcast %cst_78 : f32 to vector<8x128xf32>
    %179 = arith.addf %177, %178 : vector<8x128xf32>
    %180 = vector.extract_strided_slice %171 {offsets = [0, 128], sizes = [8, 128], strides = [1, 1]} : vector<8x512xf32> to vector<8x128xf32>
    %cst_79 = arith.constant 5.000000e-01 : f32
    %181 = vector.broadcast %cst_79 : f32 to vector<8x128xf32>
    %182 = arith.mulf %181, %180 : vector<8x128xf32>
    %183 = math.tanh %182 : vector<8x128xf32>
    %cst_80 = arith.constant 5.000000e-01 : f32
    %184 = vector.broadcast %cst_80 : f32 to vector<8x128xf32>
    %185 = arith.mulf %184, %183 : vector<8x128xf32>
    %cst_81 = arith.constant 5.000000e-01 : f32
    %186 = vector.broadcast %cst_81 : f32 to vector<8x128xf32>
    %187 = arith.addf %185, %186 : vector<8x128xf32>
    %188 = vector.extract_strided_slice %171 {offsets = [0, 256], sizes = [8, 128], strides = [1, 1]} : vector<8x512xf32> to vector<8x128xf32>
    %189 = math.tanh %188 : vector<8x128xf32>
    %190 = vector.extract_strided_slice %171 {offsets = [0, 384], sizes = [8, 128], strides = [1, 1]} : vector<8x512xf32> to vector<8x128xf32>
    %cst_82 = arith.constant 5.000000e-01 : f32
    %191 = vector.broadcast %cst_82 : f32 to vector<8x128xf32>
    %192 = arith.mulf %191, %190 : vector<8x128xf32>
    %193 = math.tanh %192 : vector<8x128xf32>
    %cst_83 = arith.constant 5.000000e-01 : f32
    %194 = vector.broadcast %cst_83 : f32 to vector<8x128xf32>
    %195 = arith.mulf %194, %193 : vector<8x128xf32>
    %cst_84 = arith.constant 5.000000e-01 : f32
    %196 = vector.broadcast %cst_84 : f32 to vector<8x128xf32>
    %197 = arith.addf %195, %196 : vector<8x128xf32>
    %198 = arith.mulf %187, %162 : vector<8x128xf32>
    %199 = arith.mulf %179, %189 : vector<8x128xf32>
    %200 = arith.addf %198, %199 : vector<8x128xf32>
    %201 = math.tanh %200 : vector<8x128xf32>
    %202 = arith.mulf %197, %201 : vector<8x128xf32>
    %203 = arith.truncf %202 : vector<8x128xf32> to vector<8x128xbf16>
    %c5_i32 = arith.constant 5 : i32
    %204 = arith.index_cast %c5_i32 : i32 to index
    %c0_85 = arith.constant 0 : index
    %c0_86 = arith.constant 0 : index
    %205 = vector.load %arg12[%204, %c0_85, %c0_86] : memref<8x8x512xf32, #tpu.memory_space<vmem>>, vector<1x8x512xf32>
    %206 = vector.shape_cast %205 : vector<1x8x512xf32> to vector<8x512xf32>
    %c0_87 = arith.constant 0 : index
    %c0_88 = arith.constant 0 : index
    %207 = vector.load %arg6[%c0_87, %c0_88] : memref<128x512xbf16, #tpu.memory_space<vmem>>, vector<128x512xbf16>
    %cst_89 = arith.constant dense<0.000000e+00> : vector<8x512xf32>
    %208 = tpu.matmul %203, %207, %cst_89 {dimension_numbers = #tpu.dot_dimension_numbers<[1], [0], [0], [1], [0, 0, 1, 1], [], []>} : vector<8x128xbf16>, vector<128x512xbf16>, vector<8x512xf32> -> vector<8x512xf32>
    %209 = arith.addf %206, %208 : vector<8x512xf32>
    %210 = vector.extract_strided_slice %209 {offsets = [0, 0], sizes = [8, 128], strides = [1, 1]} : vector<8x512xf32> to vector<8x128xf32>
    %cst_90 = arith.constant 5.000000e-01 : f32
    %211 = vector.broadcast %cst_90 : f32 to vector<8x128xf32>
    %212 = arith.mulf %211, %210 : vector<8x128xf32>
    %213 = math.tanh %212 : vector<8x128xf32>
    %cst_91 = arith.constant 5.000000e-01 : f32
    %214 = vector.broadcast %cst_91 : f32 to vector<8x128xf32>
    %215 = arith.mulf %214, %213 : vector<8x128xf32>
    %cst_92 = arith.constant 5.000000e-01 : f32
    %216 = vector.broadcast %cst_92 : f32 to vector<8x128xf32>
    %217 = arith.addf %215, %216 : vector<8x128xf32>
    %218 = vector.extract_strided_slice %209 {offsets = [0, 128], sizes = [8, 128], strides = [1, 1]} : vector<8x512xf32> to vector<8x128xf32>
    %cst_93 = arith.constant 5.000000e-01 : f32
    %219 = vector.broadcast %cst_93 : f32 to vector<8x128xf32>
    %220 = arith.mulf %219, %218 : vector<8x128xf32>
    %221 = math.tanh %220 : vector<8x128xf32>
    %cst_94 = arith.constant 5.000000e-01 : f32
    %222 = vector.broadcast %cst_94 : f32 to vector<8x128xf32>
    %223 = arith.mulf %222, %221 : vector<8x128xf32>
    %cst_95 = arith.constant 5.000000e-01 : f32
    %224 = vector.broadcast %cst_95 : f32 to vector<8x128xf32>
    %225 = arith.addf %223, %224 : vector<8x128xf32>
    %226 = vector.extract_strided_slice %209 {offsets = [0, 256], sizes = [8, 128], strides = [1, 1]} : vector<8x512xf32> to vector<8x128xf32>
    %227 = math.tanh %226 : vector<8x128xf32>
    %228 = vector.extract_strided_slice %209 {offsets = [0, 384], sizes = [8, 128], strides = [1, 1]} : vector<8x512xf32> to vector<8x128xf32>
    %cst_96 = arith.constant 5.000000e-01 : f32
    %229 = vector.broadcast %cst_96 : f32 to vector<8x128xf32>
    %230 = arith.mulf %229, %228 : vector<8x128xf32>
    %231 = math.tanh %230 : vector<8x128xf32>
    %cst_97 = arith.constant 5.000000e-01 : f32
    %232 = vector.broadcast %cst_97 : f32 to vector<8x128xf32>
    %233 = arith.mulf %232, %231 : vector<8x128xf32>
    %cst_98 = arith.constant 5.000000e-01 : f32
    %234 = vector.broadcast %cst_98 : f32 to vector<8x128xf32>
    %235 = arith.addf %233, %234 : vector<8x128xf32>
    %236 = arith.mulf %225, %200 : vector<8x128xf32>
    %237 = arith.mulf %217, %227 : vector<8x128xf32>
    %238 = arith.addf %236, %237 : vector<8x128xf32>
    %239 = math.tanh %238 : vector<8x128xf32>
    %240 = arith.mulf %235, %239 : vector<8x128xf32>
    %241 = arith.truncf %240 : vector<8x128xf32> to vector<8x128xbf16>
    %c6_i32 = arith.constant 6 : i32
    %242 = arith.index_cast %c6_i32 : i32 to index
    %c0_99 = arith.constant 0 : index
    %c0_100 = arith.constant 0 : index
    %243 = vector.load %arg12[%242, %c0_99, %c0_100] : memref<8x8x512xf32, #tpu.memory_space<vmem>>, vector<1x8x512xf32>
    %244 = vector.shape_cast %243 : vector<1x8x512xf32> to vector<8x512xf32>
    %c0_101 = arith.constant 0 : index
    %c0_102 = arith.constant 0 : index
    %245 = vector.load %arg6[%c0_101, %c0_102] : memref<128x512xbf16, #tpu.memory_space<vmem>>, vector<128x512xbf16>
    %cst_103 = arith.constant dense<0.000000e+00> : vector<8x512xf32>
    %246 = tpu.matmul %241, %245, %cst_103 {dimension_numbers = #tpu.dot_dimension_numbers<[1], [0], [0], [1], [0, 0, 1, 1], [], []>} : vector<8x128xbf16>, vector<128x512xbf16>, vector<8x512xf32> -> vector<8x512xf32>
    %247 = arith.addf %244, %246 : vector<8x512xf32>
    %248 = vector.extract_strided_slice %247 {offsets = [0, 0], sizes = [8, 128], strides = [1, 1]} : vector<8x512xf32> to vector<8x128xf32>
    %cst_104 = arith.constant 5.000000e-01 : f32
    %249 = vector.broadcast %cst_104 : f32 to vector<8x128xf32>
    %250 = arith.mulf %249, %248 : vector<8x128xf32>
    %251 = math.tanh %250 : vector<8x128xf32>
    %cst_105 = arith.constant 5.000000e-01 : f32
    %252 = vector.broadcast %cst_105 : f32 to vector<8x128xf32>
    %253 = arith.mulf %252, %251 : vector<8x128xf32>
    %cst_106 = arith.constant 5.000000e-01 : f32
    %254 = vector.broadcast %cst_106 : f32 to vector<8x128xf32>
    %255 = arith.addf %253, %254 : vector<8x128xf32>
    %256 = vector.extract_strided_slice %247 {offsets = [0, 128], sizes = [8, 128], strides = [1, 1]} : vector<8x512xf32> to vector<8x128xf32>
    %cst_107 = arith.constant 5.000000e-01 : f32
    %257 = vector.broadcast %cst_107 : f32 to vector<8x128xf32>
    %258 = arith.mulf %257, %256 : vector<8x128xf32>
    %259 = math.tanh %258 : vector<8x128xf32>
    %cst_108 = arith.constant 5.000000e-01 : f32
    %260 = vector.broadcast %cst_108 : f32 to vector<8x128xf32>
    %261 = arith.mulf %260, %259 : vector<8x128xf32>
    %cst_109 = arith.constant 5.000000e-01 : f32
    %262 = vector.broadcast %cst_109 : f32 to vector<8x128xf32>
    %263 = arith.addf %261, %262 : vector<8x128xf32>
    %264 = vector.extract_strided_slice %247 {offsets = [0, 256], sizes = [8, 128], strides = [1, 1]} : vector<8x512xf32> to vector<8x128xf32>
    %265 = math.tanh %264 : vector<8x128xf32>
    %266 = vector.extract_strided_slice %247 {offsets = [0, 384], sizes = [8, 128], strides = [1, 1]} : vector<8x512xf32> to vector<8x128xf32>
    %cst_110 = arith.constant 5.000000e-01 : f32
    %267 = vector.broadcast %cst_110 : f32 to vector<8x128xf32>
    %268 = arith.mulf %267, %266 : vector<8x128xf32>
    %269 = math.tanh %268 : vector<8x128xf32>
    %cst_111 = arith.constant 5.000000e-01 : f32
    %270 = vector.broadcast %cst_111 : f32 to vector<8x128xf32>
    %271 = arith.mulf %270, %269 : vector<8x128xf32>
    %cst_112 = arith.constant 5.000000e-01 : f32
    %272 = vector.broadcast %cst_112 : f32 to vector<8x128xf32>
    %273 = arith.addf %271, %272 : vector<8x128xf32>
    %274 = arith.mulf %263, %238 : vector<8x128xf32>
    %275 = arith.mulf %255, %265 : vector<8x128xf32>
    %276 = arith.addf %274, %275 : vector<8x128xf32>
    %277 = math.tanh %276 : vector<8x128xf32>
    %278 = arith.mulf %273, %277 : vector<8x128xf32>
    %279 = arith.truncf %278 : vector<8x128xf32> to vector<8x128xbf16>
    %c7_i32 = arith.constant 7 : i32
    %280 = arith.index_cast %c7_i32 : i32 to index
    %c0_113 = arith.constant 0 : index
    %c0_114 = arith.constant 0 : index
    %281 = vector.load %arg12[%280, %c0_113, %c0_114] : memref<8x8x512xf32, #tpu.memory_space<vmem>>, vector<1x8x512xf32>
    %282 = vector.shape_cast %281 : vector<1x8x512xf32> to vector<8x512xf32>
    %c0_115 = arith.constant 0 : index
    %c0_116 = arith.constant 0 : index
    %283 = vector.load %arg6[%c0_115, %c0_116] : memref<128x512xbf16, #tpu.memory_space<vmem>>, vector<128x512xbf16>
    %cst_117 = arith.constant dense<0.000000e+00> : vector<8x512xf32>
    %284 = tpu.matmul %279, %283, %cst_117 {dimension_numbers = #tpu.dot_dimension_numbers<[1], [0], [0], [1], [0, 0, 1, 1], [], []>} : vector<8x128xbf16>, vector<128x512xbf16>, vector<8x512xf32> -> vector<8x512xf32>
    %285 = arith.addf %282, %284 : vector<8x512xf32>
    %286 = vector.extract_strided_slice %285 {offsets = [0, 0], sizes = [8, 128], strides = [1, 1]} : vector<8x512xf32> to vector<8x128xf32>
    %cst_118 = arith.constant 5.000000e-01 : f32
    %287 = vector.broadcast %cst_118 : f32 to vector<8x128xf32>
    %288 = arith.mulf %287, %286 : vector<8x128xf32>
    %289 = math.tanh %288 : vector<8x128xf32>
    %cst_119 = arith.constant 5.000000e-01 : f32
    %290 = vector.broadcast %cst_119 : f32 to vector<8x128xf32>
    %291 = arith.mulf %290, %289 : vector<8x128xf32>
    %cst_120 = arith.constant 5.000000e-01 : f32
    %292 = vector.broadcast %cst_120 : f32 to vector<8x128xf32>
    %293 = arith.addf %291, %292 : vector<8x128xf32>
    %294 = vector.extract_strided_slice %285 {offsets = [0, 128], sizes = [8, 128], strides = [1, 1]} : vector<8x512xf32> to vector<8x128xf32>
    %cst_121 = arith.constant 5.000000e-01 : f32
    %295 = vector.broadcast %cst_121 : f32 to vector<8x128xf32>
    %296 = arith.mulf %295, %294 : vector<8x128xf32>
    %297 = math.tanh %296 : vector<8x128xf32>
    %cst_122 = arith.constant 5.000000e-01 : f32
    %298 = vector.broadcast %cst_122 : f32 to vector<8x128xf32>
    %299 = arith.mulf %298, %297 : vector<8x128xf32>
    %cst_123 = arith.constant 5.000000e-01 : f32
    %300 = vector.broadcast %cst_123 : f32 to vector<8x128xf32>
    %301 = arith.addf %299, %300 : vector<8x128xf32>
    %302 = vector.extract_strided_slice %285 {offsets = [0, 256], sizes = [8, 128], strides = [1, 1]} : vector<8x512xf32> to vector<8x128xf32>
    %303 = math.tanh %302 : vector<8x128xf32>
    %304 = vector.extract_strided_slice %285 {offsets = [0, 384], sizes = [8, 128], strides = [1, 1]} : vector<8x512xf32> to vector<8x128xf32>
    %cst_124 = arith.constant 5.000000e-01 : f32
    %305 = vector.broadcast %cst_124 : f32 to vector<8x128xf32>
    %306 = arith.mulf %305, %304 : vector<8x128xf32>
    %307 = math.tanh %306 : vector<8x128xf32>
    %cst_125 = arith.constant 5.000000e-01 : f32
    %308 = vector.broadcast %cst_125 : f32 to vector<8x128xf32>
    %309 = arith.mulf %308, %307 : vector<8x128xf32>
    %cst_126 = arith.constant 5.000000e-01 : f32
    %310 = vector.broadcast %cst_126 : f32 to vector<8x128xf32>
    %311 = arith.addf %309, %310 : vector<8x128xf32>
    %312 = arith.mulf %301, %276 : vector<8x128xf32>
    %313 = arith.mulf %293, %303 : vector<8x128xf32>
    %314 = arith.addf %312, %313 : vector<8x128xf32>
    %315 = math.tanh %314 : vector<8x128xf32>
    %316 = arith.mulf %311, %315 : vector<8x128xf32>
    %317 = arith.truncf %316 : vector<8x128xf32> to vector<8x128xbf16>
    %c8_i32 = arith.constant 8 : i32
    %c0_127 = arith.constant 0 : index
    %c0_128 = arith.constant 0 : index
    %318 = vector.load %arg13[%c0_127, %c0_128] : memref<8x128xbf16, #tpu.memory_space<vmem>>, vector<8x128xbf16>
    tpu.vector_store %arg13[%c0_127, %c0_128], %317 {strides = array<i32>} : memref<8x128xbf16, #tpu.memory_space<vmem>>, vector<8x128xbf16>,
    %c0_129 = arith.constant 0 : index
    %c0_130 = arith.constant 0 : index
    %319 = vector.load %arg14[%c0_129, %c0_130] : memref<8x128xf32, #tpu.memory_space<vmem>>, vector<8x128xf32>
    tpu.vector_store %arg14[%c0_129, %c0_130], %314 {strides = array<i32>} : memref<8x128xf32, #tpu.memory_space<vmem>>, vector<8x128xf32>,
    %c0_i32_131 = arith.constant 0 : i32
    %320 = arith.cmpi eq, %arg1, %c0_i32_131 : i32
    %321 = arith.extui %320 : i1 to i32
    %c0_i32_132 = arith.constant 0 : i32
    %322 = arith.cmpi ne, %321, %c0_i32_132 : i32
    scf.if %322 {
      %c0_133 = arith.constant 0 : index
      %c0_134 = arith.constant 0 : index
      %323 = vector.load %arg3[%c0_133, %c0_134] : memref<8x128xbf16, #tpu.memory_space<vmem>>, vector<8x128xbf16>
      %c0_135 = arith.constant 0 : index
      %c0_136 = arith.constant 0 : index
      %324 = vector.load %arg7[%c0_135, %c0_136] : memref<128x512xbf16, #tpu.memory_space<vmem>>, vector<128x512xbf16>
      %cst_137 = arith.constant dense<0.000000e+00> : vector<8x512xf32>
      %325 = tpu.matmul %323, %324, %cst_137 {dimension_numbers = #tpu.dot_dimension_numbers<[1], [0], [0], [1], [0, 0, 1, 1], [], []>} : vector<8x128xbf16>, vector<128x512xbf16>, vector<8x512xf32> -> vector<8x512xf32>
      %c0_138 = arith.constant 0 : index
      %c0_139 = arith.constant 0 : index
      %326 = vector.load %arg8[%c0_138, %c0_139] : memref<1x512xf32, #tpu.memory_space<vmem>>, vector<1x512xf32>
      %327 = vector.broadcast %326 : vector<1x512xf32> to vector<8x512xf32>
      %328 = arith.addf %325, %327 : vector<8x512xf32>
      %329 = vector.extract_strided_slice %328 {offsets = [0, 0], sizes = [8, 128], strides = [1, 1]} : vector<8x512xf32> to vector<8x128xf32>
      %cst_140 = arith.constant 5.000000e-01 : f32
      %330 = vector.broadcast %cst_140 : f32 to vector<8x128xf32>
      %331 = arith.mulf %330, %329 : vector<8x128xf32>
      %332 = math.tanh %331 : vector<8x128xf32>
      %cst_141 = arith.constant 5.000000e-01 : f32
      %333 = vector.broadcast %cst_141 : f32 to vector<8x128xf32>
      %334 = arith.mulf %333, %332 : vector<8x128xf32>
      %cst_142 = arith.constant 5.000000e-01 : f32
      %335 = vector.broadcast %cst_142 : f32 to vector<8x128xf32>
      %336 = arith.addf %334, %335 : vector<8x128xf32>
      %337 = vector.extract_strided_slice %328 {offsets = [0, 256], sizes = [8, 128], strides = [1, 1]} : vector<8x512xf32> to vector<8x128xf32>
      %338 = math.tanh %337 : vector<8x128xf32>
      %339 = vector.extract_strided_slice %328 {offsets = [0, 384], sizes = [8, 128], strides = [1, 1]} : vector<8x512xf32> to vector<8x128xf32>
      %cst_143 = arith.constant 5.000000e-01 : f32
      %340 = vector.broadcast %cst_143 : f32 to vector<8x128xf32>
      %341 = arith.mulf %340, %339 : vector<8x128xf32>
      %342 = math.tanh %341 : vector<8x128xf32>
      %cst_144 = arith.constant 5.000000e-01 : f32
      %343 = vector.broadcast %cst_144 : f32 to vector<8x128xf32>
      %344 = arith.mulf %343, %342 : vector<8x128xf32>
      %cst_145 = arith.constant 5.000000e-01 : f32
      %345 = vector.broadcast %cst_145 : f32 to vector<8x128xf32>
      %346 = arith.addf %344, %345 : vector<8x128xf32>
      %347 = arith.mulf %336, %338 : vector<8x128xf32>
      %348 = math.tanh %347 : vector<8x128xf32>
      %349 = arith.mulf %346, %348 : vector<8x128xf32>
      %350 = arith.truncf %349 : vector<8x128xf32> to vector<8x128xbf16>
      %c0_146 = arith.constant 0 : index
      %c0_147 = arith.constant 0 : index
      %351 = vector.load %arg9[%c0_146, %c0_147] : memref<256x128xbf16, #tpu.memory_space<vmem>>, vector<256x128xbf16>
      %352 = vector.extract_strided_slice %351 {offsets = [0, 0], sizes = [128, 128], strides = [1, 1]} : vector<256x128xbf16> to vector<128x128xbf16>
      %cst_148 = arith.constant dense<0.000000e+00> : vector<8x128xf32>
      %353 = tpu.matmul %317, %352, %cst_148 {dimension_numbers = #tpu.dot_dimension_numbers<[1], [0], [0], [1], [0, 0, 1, 1], [], []>} : vector<8x128xbf16>, vector<128x128xbf16>, vector<8x128xf32> -> vector<8x128xf32>
      %354 = vector.extract_strided_slice %351 {offsets = [128, 0], sizes = [128, 128], strides = [1, 1]} : vector<256x128xbf16> to vector<128x128xbf16>
      %cst_149 = arith.constant dense<0.000000e+00> : vector<8x128xf32>
      %355 = tpu.matmul %350, %354, %cst_149 {dimension_numbers = #tpu.dot_dimension_numbers<[1], [0], [0], [1], [0, 0, 1, 1], [], []>} : vector<8x128xbf16>, vector<128x128xbf16>, vector<8x128xf32> -> vector<8x128xf32>
      %356 = arith.addf %353, %355 : vector<8x128xf32>
      %c0_150 = arith.constant 0 : index
      %c0_151 = arith.constant 0 : index
      %357 = vector.load %arg10[%c0_150, %c0_151] : memref<1x128xf32, #tpu.memory_space<vmem>>, vector<1x128xf32>
      %358 = vector.broadcast %357 : vector<1x128xf32> to vector<8x128xf32>
      %359 = arith.addf %356, %358 : vector<8x128xf32>
      %c0_152 = arith.constant 0 : index
      %c0_153 = arith.constant 0 : index
      %360 = vector.load %arg11[%c0_152, %c0_153] : memref<8x128xf32, #tpu.memory_space<vmem>>, vector<8x128xf32>
      tpu.vector_store %arg11[%c0_152, %c0_153], %359 {strides = array<i32>} : memref<8x128xf32, #tpu.memory_space<vmem>>, vector<8x128xf32>,
    } else {
    }
    return
  }
  func.func @transform_0(%arg0: i32, %arg1: i32) -> (i32, i32, i32) {
    %c0_i32 = arith.constant 0 : i32
    %c0_i32_0 = arith.constant 0 : i32
    return %arg1, %arg0, %c0_i32 : i32, i32, i32
  }
  func.func @transform_1(%arg0: i32, %arg1: i32) -> (i32, i32) {
    %c0_i32 = arith.constant 0 : i32
    %c0_i32_0 = arith.constant 0 : i32
    return %arg0, %c0_i32 : i32, i32
  }
  func.func @transform_2(%arg0: i32, %arg1: i32) -> (i32, i32) {
    %c0_i32 = arith.constant 0 : i32
    %c0_i32_0 = arith.constant 0 : i32
    %c0_i32_1 = arith.constant 0 : i32
    return %c0_i32, %c0_i32_0 : i32, i32
  }
  func.func @transform_3(%arg0: i32, %arg1: i32) -> (i32, i32) {
    %c0_i32 = arith.constant 0 : i32
    %c0_i32_0 = arith.constant 0 : i32
    %c0_i32_1 = arith.constant 0 : i32
    return %c0_i32, %c0_i32_0 : i32, i32
  }
  func.func @transform_4(%arg0: i32, %arg1: i32) -> (i32, i32) {
    %c0_i32 = arith.constant 0 : i32
    %c0_i32_0 = arith.constant 0 : i32
    %c0_i32_1 = arith.constant 0 : i32
    return %c0_i32, %c0_i32_0 : i32, i32
  }
  func.func @transform_5(%arg0: i32, %arg1: i32) -> (i32, i32) {
    %c0_i32 = arith.constant 0 : i32
    %c0_i32_0 = arith.constant 0 : i32
    %c0_i32_1 = arith.constant 0 : i32
    return %c0_i32, %c0_i32_0 : i32, i32
  }
  func.func @transform_6(%arg0: i32, %arg1: i32) -> (i32, i32) {
    %c0_i32 = arith.constant 0 : i32
    %c0_i32_0 = arith.constant 0 : i32
    %c0_i32_1 = arith.constant 0 : i32
    return %c0_i32, %c0_i32_0 : i32, i32
  }
  func.func @transform_7(%arg0: i32, %arg1: i32) -> (i32, i32) {
    %c0_i32 = arith.constant 0 : i32
    %c0_i32_0 = arith.constant 0 : i32
    %c0_i32_1 = arith.constant 0 : i32
    return %c0_i32, %c0_i32_0 : i32, i32
  }
  func.func @transform_8(%arg0: i32, %arg1: i32) -> (i32, i32) {
    %c0_i32 = arith.constant 0 : i32
    %c0_i32_0 = arith.constant 0 : i32
    %c0_i32_1 = arith.constant 0 : i32
    return %c0_i32, %c0_i32_0 : i32, i32
  }
  func.func @transform_9(%arg0: i32, %arg1: i32) -> (i32, i32) {
    %c0_i32 = arith.constant 0 : i32
    %c0_i32_0 = arith.constant 0 : i32
    return %arg0, %c0_i32 : i32, i32
  }
}

</mosaic_0001>

<llo_original>
// kernel: tpu_custom_call.1
$region0: #{tpu_custom_call.1}
  #allocation0 [shape = 'u32[]', space=smem, size = 0x4, offset = 0x4, fixed_abs, tag = 'smem constant byte address 0x4 - core index']
  #allocation1 [shape = 'u32[144,128]{1,0:T(1,128)}', space=vmem, size = 0x12000, scoped, tag = 'internal scratch']
  #allocation2 [shape = 'f32[8,8,512]{2,1,0:T(8,128)}', space=vmem, size = 0x20000, scoped, tag = 'scratch operand']
  #allocation3 [shape = 'bf16[8,128]{1,0:T(8,128)(2,1)}', space=vmem, size = 0x800, scoped, tag = 'scratch operand']
  #allocation4 [shape = 'f32[8,128]{1,0:T(8,128)}', space=vmem, size = 0x1000, scoped, tag = 'scratch operand']
  %s0 = inlined_call_operand.hbm [shape: bf16[8,8,128], index: 0, kind: input, shape index: {}]
  %s1 = inlined_call_operand.hbm [shape: bf16[8,128], index: 1, kind: input, shape index: {}]
  %s2 = inlined_call_operand.hbm [shape: bf16[128,512], index: 2, kind: input, shape index: {}]
  %s3 = inlined_call_operand.vmem [shape: f32[1,512], index: 3, kind: input, shape index: {}]
  %s4 = inlined_call_operand.hbm [shape: bf16[128,512], index: 4, kind: input, shape index: {}]
  %s5 = inlined_call_operand.hbm [shape: bf16[128,512], index: 5, kind: input, shape index: {}]
  %s6 = inlined_call_operand.vmem [shape: f32[1,512], index: 6, kind: input, shape index: {}]
  %s7 = inlined_call_operand.hbm [shape: bf16[256,128], index: 7, kind: input, shape index: {}]
  %s8 = inlined_call_operand.vmem [shape: f32[1,128], index: 8, kind: input, shape index: {}]
  %s9 = inlined_call_operand.hbm [shape: f32[8,128], index: 9, kind: output, shape index: {}]
  %s10 = sld [smem:[#allocation0]]
  $region78: #{tpu_custom_call.1} parent=0
    _
  %s12 = ssub.s32 1, %s10
  %s13 = scalar_select 0, %s12, %s10
  $region1: #{tpu_custom_call.1} parent=0
    #allocation5 [shape = 'u8[16384]{0}', space=vmem, size = 0x4000, scoped, tag = 'input window, operand 0, single buffered']
    #allocation6 [shape = 's32[1]{0}', space=sflag, size = 0x4, scoped, tag = 'scoped memory for tpu_custom_call.1']
    #allocation7 [shape = 's32[1]{0}', space=sflag, size = 0x4, scoped, tag = 'scoped memory for tpu_custom_call.1']
    #allocation8 [shape = 'u8[2048]{0}', space=vmem, size = 0x800, scoped, tag = 'input window, operand 1, single buffered']
    #allocation9 [shape = 's32[1]{0}', space=sflag, size = 0x4, scoped, tag = 'scoped memory for tpu_custom_call.1']
    #allocation10 [shape = 'u8[131072]{0}', space=vmem, size = 0x20000, scoped, tag = 'input window, operand 2, single buffered']
    #allocation11 [shape = 'u8[131072]{0}', space=vmem, size = 0x20000, scoped, tag = 'input window, operand 4, single buffered']
    #allocation12 [shape = 's32[1]{0}', space=sflag, size = 0x4, scoped, tag = 'scoped memory for tpu_custom_call.1']
    #allocation13 [shape = 'u8[131072]{0}', space=vmem, size = 0x20000, scoped, tag = 'input window, operand 5, single buffered']
    #allocation14 [shape = 'u8[65536]{0}', space=vmem, size = 0x10000, scoped, tag = 'input window, operand 7, single buffered']
    #allocation15 [shape = 's32[1]{0}', space=sflag, size = 0x4, scoped, tag = 'scoped memory for tpu_custom_call.1']
    #allocation16 [shape = 'u8[4096]{0}', space=vmem, size = 0x1000, scoped, tag = 'output window, operand 0, single buffered']
    %14 = vsyncpa [#allocation6], 0
    %15 = vsyncpa [#allocation9], 0
    %16 = vsyncpa [#allocation12], 0
    %17 = vsyncpa [#allocation15], 0
    %18 = vsyncpa [#allocation7], 0
    // Predicated region
    $region2: #{tpu_custom_call.1} parent=1 // pred_check
      _
    $region3: #{tpu_custom_call.1} parent=1 // pred_check_branch
      %20 = sbr.rel (0) target = $region5
    $region4: #{tpu_custom_call.1} parent=1 // pred_region
      %s22 = ssub.s32 512, 512
      %23 = vsyncadd [#allocation6], %s22
      %s24 = sshll.u32 [#allocation5], 4
      %s25 = int_to_ptr.vmem [resolvable:$true] %s24
      %30 = dma.hbm_to_vmem [thread:$0]  %s0, 512, %s25, [#allocation6], 64, 64, 4
    $region5: #{tpu_custom_call.1} parent=1 // pred_fallthru
      _
    // Predicated region
    $region6: #{tpu_custom_call.1} parent=1 // pred_check
      _
    $region7: #{tpu_custom_call.1} parent=1 // pred_check_branch
      %32 = sbr.rel (0) target = $region9
    $region8: #{tpu_custom_call.1} parent=1 // pred_region
      %s34 = ssub.s32 64, 64
      %35 = vsyncadd [#allocation9], %s34
      %s37 = sshll.u32 [#allocation8], 4
      %s38 = int_to_ptr.vmem [resolvable:$true] %s37
      %40 = dma.hbm_to_vmem [thread:$0]  %s1, 64, %s38, [#allocation9]
    $region9: #{tpu_custom_call.1} parent=1 // pred_fallthru
      _
    // Predicated region
    $region10: #{tpu_custom_call.1} parent=1 // pred_check
      _
    $region11: #{tpu_custom_call.1} parent=1 // pred_check_branch
      %42 = sbr.rel (0) target = $region13
    $region12: #{tpu_custom_call.1} parent=1 // pred_region
      %s44 = ssub.s32 4096, 4096
      %45 = vsyncadd [#allocation9], %s44
      %s46 = sshll.u32 [#allocation10], 4
      %s47 = int_to_ptr.vmem [resolvable:$true] %s46
      %52 = dma.hbm_to_vmem [thread:$0]  %s2, 4096, %s47, [#allocation9], 256, 256, 16
    $region13: #{tpu_custom_call.1} parent=1 // pred_fallthru
      _
    // Predicated region
    $region14: #{tpu_custom_call.1} parent=1 // pred_check
      _
    $region15: #{tpu_custom_call.1} parent=1 // pred_check_branch
      %54 = sbr.rel (0) target = $region17
    $region16: #{tpu_custom_call.1} parent=1 // pred_region
      _
    $region17: #{tpu_custom_call.1} parent=1 // pred_fallthru
      _
    // Predicated region
    $region18: #{tpu_custom_call.1} parent=1 // pred_check
      _
    $region19: #{tpu_custom_call.1} parent=1 // pred_check_branch
      %56 = sbr.rel (0) target = $region21
    $region20: #{tpu_custom_call.1} parent=1 // pred_region
      %s58 = ssub.s32 4096, 4096
      %59 = vsyncadd [#allocation12], %s58
      %s60 = sshll.u32 [#allocation11], 4
      %s61 = int_to_ptr.vmem [resolvable:$true] %s60
      %66 = dma.hbm_to_vmem [thread:$0]  %s4, 4096, %s61, [#allocation12], 256, 256, 16
    $region21: #{tpu_custom_call.1} parent=1 // pred_fallthru
      _
    // Predicated region
    $region22: #{tpu_custom_call.1} parent=1 // pred_check
      _
    $region23: #{tpu_custom_call.1} parent=1 // pred_check_branch
      %68 = sbr.rel (0) target = $region25
    $region24: #{tpu_custom_call.1} parent=1 // pred_region
      %s70 = ssub.s32 4096, 4096
      %71 = vsyncadd [#allocation12], %s70
      %s72 = sshll.u32 [#allocation13], 4
      %s73 = int_to_ptr.vmem [resolvable:$true] %s72
      %78 = dma.hbm_to_vmem [thread:$0]  %s5, 4096, %s73, [#allocation12], 256, 256, 16
    $region25: #{tpu_custom_call.1} parent=1 // pred_fallthru
      _
    // Predicated region
    $region26: #{tpu_custom_call.1} parent=1 // pred_check
      _
    $region27: #{tpu_custom_call.1} parent=1 // pred_check_branch
      %80 = sbr.rel (0) target = $region29
    $region28: #{tpu_custom_call.1} parent=1 // pred_region
      _
    $region29: #{tpu_custom_call.1} parent=1 // pred_fallthru
      _
    // Predicated region
    $region30: #{tpu_custom_call.1} parent=1 // pred_check
      _
    $region31: #{tpu_custom_call.1} parent=1 // pred_check_branch
      %82 = sbr.rel (0) target = $region33
    $region32: #{tpu_custom_call.1} parent=1 // pred_region
      %s84 = ssub.s32 2048, 2048
      %85 = vsyncadd [#allocation15], %s84
      %s86 = sshll.u32 [#allocation14], 4
      %s87 = int_to_ptr.vmem [resolvable:$true] %s86
      %92 = dma.hbm_to_vmem [thread:$0]  %s7, 2048, %s87, [#allocation15], 64, 64, 4
    $region33: #{tpu_custom_call.1} parent=1 // pred_fallthru
      _
    // Predicated region
    $region34: #{tpu_custom_call.1} parent=1 // pred_check
      _
    $region35: #{tpu_custom_call.1} parent=1 // pred_check_branch
      %94 = sbr.rel (0) target = $region37
    $region36: #{tpu_custom_call.1} parent=1 // pred_region
      _
    $region37: #{tpu_custom_call.1} parent=1 // pred_fallthru
      _
    // Predicated region
    $region38: #{tpu_custom_call.1} parent=1 // pred_check
      _
    $region39: #{tpu_custom_call.1} parent=1 // pred_check_branch
      %96 = sbr.rel (0) target = $region41
    $region40: #{tpu_custom_call.1} parent=1 // pred_region
      %97 = dma.done [#allocation6], 512
    $region41: #{tpu_custom_call.1} parent=1 // pred_fallthru
      _
    // Predicated region
    $region42: #{tpu_custom_call.1} parent=1 // pred_check
      _
    $region43: #{tpu_custom_call.1} parent=1 // pred_check_branch
      %99 = sbr.rel (0) target = $region45
    $region44: #{tpu_custom_call.1} parent=1 // pred_region
      %100 = dma.done [#allocation9], 64
    $region45: #{tpu_custom_call.1} parent=1 // pred_fallthru
      _
    // Predicated region
    $region46: #{tpu_custom_call.1} parent=1 // pred_check
      _
    $region47: #{tpu_custom_call.1} parent=1 // pred_check_branch
      %102 = sbr.rel (0) target = $region49
    $region48: #{tpu_custom_call.1} parent=1 // pred_region
      %103 = dma.done [#allocation9], 4096
    $region49: #{tpu_custom_call.1} parent=1 // pred_fallthru
      _
    // Predicated region
    $region50: #{tpu_custom_call.1} parent=1 // pred_check
      _
    $region51: #{tpu_custom_call.1} parent=1 // pred_check_branch
      %105 = sbr.rel (0) target = $region53
    $region52: #{tpu_custom_call.1} parent=1 // pred_region
      %106 = dma.done [#allocation12], 4096
    $region53: #{tpu_custom_call.1} parent=1 // pred_fallthru
      _
    // Predicated region
    $region54: #{tpu_custom_call.1} parent=1 // pred_check
      _
    $region55: #{tpu_custom_call.1} parent=1 // pred_check_branch
      %108 = sbr.rel (0) target = $region57
    $region56: #{tpu_custom_call.1} parent=1 // pred_region
      %109 = dma.done [#allocation12], 4096
    $region57: #{tpu_custom_call.1} parent=1 // pred_fallthru
      _
    // Predicated region
    $region58: #{tpu_custom_call.1} parent=1 // pred_check
      _
    $region59: #{tpu_custom_call.1} parent=1 // pred_check_branch
      %111 = sbr.rel (0) target = $region61
    $region60: #{tpu_custom_call.1} parent=1 // pred_region
      %112 = dma.done [#allocation15], 2048
    $region61: #{tpu_custom_call.1} parent=1 // pred_fallthru
      _
    %p114 = scmp.eq.s32.totalorder 0, 0
    // Predicated region
    $region62: #{tpu_custom_call.1} parent=1 // pred_check
      %p115 = pneg %p114
    $region63: #{tpu_custom_call.1} parent=1 // pred_check_branch
      %117 = sbr.rel (%p115) target = $region65
    $region64: #{tpu_custom_call.1} parent=1 // pred_region
      %118 = vst [vmem:[#allocation3] sm:$0xf] 0
      %119 = vst [vmem:[#allocation4] sm:$0xff] 0.0
    $region65: #{tpu_custom_call.1} parent=1 // pred_fallthru
      _
    %v120 = vld [vmem:[#allocation5] sm:$0xf]
    %v121 = vld [vmem:[#allocation5 + $0x4] sm:$0xf]
    %v122 = vld [vmem:[#allocation5 + $0x8] sm:$0xf]
    %v123 = vld [vmem:[#allocation5 + $0xc] sm:$0xf]
    %v124 = vld [vmem:[#allocation5 + $0x10] sm:$0xf]
    %v125 = vld [vmem:[#allocation5 + $0x14] sm:$0xf]
    %v126 = vld [vmem:[#allocation5 + $0x18] sm:$0xf]
    %v127 = vld [vmem:[#allocation5 + $0x1c] sm:$0xf]
    %v128 = vld [vmem:[#allocation10] sm:$0xff]
    %v129 = vld [vmem:[#allocation10 + $0x8] sm:$0xff]
    %v130 = vld [vmem:[#allocation10 + $0x10] sm:$0xff]
    %v131 = vld [vmem:[#allocation10 + $0x18] sm:$0xff]
    %v132 = vld [vmem:[#allocation10 + $0x20] sm:$0xff]
    %v133 = vld [vmem:[#allocation10 + $0x28] sm:$0xff]
    %v134 = vld [vmem:[#allocation10 + $0x30] sm:$0xff]
    %v135 = vld [vmem:[#allocation10 + $0x38] sm:$0xff]
    %v136 = vld [vmem:[#allocation10 + $0x40] sm:$0xff]
    %v137 = vld [vmem:[#allocation10 + $0x48] sm:$0xff]
    %v138 = vld [vmem:[#allocation10 + $0x50] sm:$0xff]
    %v139 = vld [vmem:[#allocation10 + $0x58] sm:$0xff]
    %v140 = vld [vmem:[#allocation10 + $0x60] sm:$0xff]
    %v141 = vld [vmem:[#allocation10 + $0x68] sm:$0xff]
    %v142 = vld [vmem:[#allocation10 + $0x70] sm:$0xff]
    %v143 = vld [vmem:[#allocation10 + $0x78] sm:$0xff]
    %v144 = vld [vmem:[#allocation10 + $0x80] sm:$0xff]
    %v145 = vld [vmem:[#allocation10 + $0x88] sm:$0xff]
    %v146 = vld [vmem:[#allocation10 + $0x90] sm:$0xff]
    %v147 = vld [vmem:[#allocation10 + $0x98] sm:$0xff]
    %v148 = vld [vmem:[#allocation10 + $0xa0] sm:$0xff]
    %v149 = vld [vmem:[#allocation10 + $0xa8] sm:$0xff]
    %v150 = vld [vmem:[#allocation10 + $0xb0] sm:$0xff]
    %v151 = vld [vmem:[#allocation10 + $0xb8] sm:$0xff]
    %v152 = vld [vmem:[#allocation10 + $0xc0] sm:$0xff]
    %v153 = vld [vmem:[#allocation10 + $0xc8] sm:$0xff]
    %v154 = vld [vmem:[#allocation10 + $0xd0] sm:$0xff]
    %v155 = vld [vmem:[#allocation10 + $0xd8] sm:$0xff]
    %v156 = vld [vmem:[#allocation10 + $0xe0] sm:$0xff]
    %v157 = vld [vmem:[#allocation10 + $0xe8] sm:$0xff]
    %v158 = vld [vmem:[#allocation10 + $0xf0] sm:$0xff]
    %v159 = vld [vmem:[#allocation10 + $0xf8] sm:$0xff]
    %v160 = vld [vmem:[%s3] sm:$0xf]
    %v162 = vlaneseq
    %v163 = vshrl.u32 %v162, 7
    %v164 = vsub.s32 0, %v163
    %v165 = vrot.slane %v160, %v164
    %v166 = vlaneseq
    %v167 = vshrl.u32 %v166, 7
    %v168 = vsub.s32 1, %v167
    %v169 = vrot.slane %v160, %v168
    %v170 = vlaneseq
    %v171 = vshrl.u32 %v170, 7
    %v172 = vsub.s32 2, %v171
    %v173 = vrot.slane %v160, %v172
    %v174 = vlaneseq
    %v175 = vshrl.u32 %v174, 7
    %v176 = vsub.s32 3, %v175
    %v177 = vrot.slane %v160, %v176
    %v190 = vunpack.c.l.b16 %v120
    %v191 = vunpack.c.l.b16 %v121
    %v192 = vunpack.c.l.b16 %v122
    %v193 = vunpack.c.l.b16 %v123
    %v194 = vunpack.c.l.b16 %v124
    %v195 = vunpack.c.l.b16 %v125
    %v196 = vunpack.c.l.b16 %v126
    %v197 = vunpack.c.l.b16 %v127
    %v198 = vpack.c.b16 %v191, %v190
    %v199 = vpack.c.b16 %v193, %v192
    %v200 = vpack.c.b16 %v195, %v194
    %v201 = vpack.c.b16 %v197, %v196
    %v238 = vunpack.c.l.b16 %v128
    %v239 = vunpack.c.h.b16 %v128
    %v240 = vunpack.c.l.b16 %v129
    %v241 = vunpack.c.h.b16 %v129
    %v242 = vunpack.c.l.b16 %v130
    %v243 = vunpack.c.h.b16 %v130
    %v244 = vunpack.c.l.b16 %v131
    %v245 = vunpack.c.h.b16 %v131
    %v246 = vunpack.c.l.b16 %v132
    %v247 = vunpack.c.h.b16 %v132
    %v248 = vunpack.c.l.b16 %v133
    %v249 = vunpack.c.h.b16 %v133
    %v250 = vunpack.c.l.b16 %v134
    %v251 = vunpack.c.h.b16 %v134
    %v252 = vunpack.c.l.b16 %v135
    %v253 = vunpack.c.h.b16 %v135
    %v254 = vunpack.c.l.b16 %v136
    %v255 = vunpack.c.h.b16 %v136
    %v256 = vunpack.c.l.b16 %v137
    %v257 = vunpack.c.h.b16 %v137
    %v258 = vunpack.c.l.b16 %v138
    %v259 = vunpack.c.h.b16 %v138
    %v260 = vunpack.c.l.b16 %v139
    %v261 = vunpack.c.h.b16 %v139
    %v262 = vunpack.c.l.b16 %v140
    %v263 = vunpack.c.h.b16 %v140
    %v264 = vunpack.c.l.b16 %v141
    %v265 = vunpack.c.h.b16 %v141
    %v266 = vunpack.c.l.b16 %v142
    %v267 = vunpack.c.h.b16 %v142
    %v268 = vunpack.c.l.b16 %v143
    %v269 = vunpack.c.h.b16 %v143
    %v270 = vunpack.c.l.b16 %v144
    %v271 = vunpack.c.h.b16 %v144
    %v272 = vunpack.c.l.b16 %v145
    %v273 = vunpack.c.h.b16 %v145
    %v274 = vunpack.c.l.b16 %v146
    %v275 = vunpack.c.h.b16 %v146
    %v276 = vunpack.c.l.b16 %v147
    %v277 = vunpack.c.h.b16 %v147
    %v278 = vunpack.c.l.b16 %v148
    %v279 = vunpack.c.h.b16 %v148
    %v280 = vunpack.c.l.b16 %v149
    %v281 = vunpack.c.h.b16 %v149
    %v282 = vunpack.c.l.b16 %v150
    %v283 = vunpack.c.h.b16 %v150
    %v284 = vunpack.c.l.b16 %v151
    %v285 = vunpack.c.h.b16 %v151
    %v286 = vunpack.c.l.b16 %v152
    %v287 = vunpack.c.h.b16 %v152
    %v288 = vunpack.c.l.b16 %v153
    %v289 = vunpack.c.h.b16 %v153
    %v290 = vunpack.c.l.b16 %v154
    %v291 = vunpack.c.h.b16 %v154
    %v292 = vunpack.c.l.b16 %v155
    %v293 = vunpack.c.h.b16 %v155
    %v294 = vunpack.c.l.b16 %v156
    %v295 = vunpack.c.h.b16 %v156
    %v296 = vunpack.c.l.b16 %v157
    %v297 = vunpack.c.h.b16 %v157
    %v298 = vunpack.c.l.b16 %v158
    %v299 = vunpack.c.h.b16 %v158
    %v300 = vunpack.c.l.b16 %v159
    %v301 = vunpack.c.h.b16 %v159
    %v302 = vpack.c.b16 %v242, %v238
    %v303 = vpack.c.b16 %v243, %v239
    %v304 = vpack.c.b16 %v244, %v240
    %v305 = vpack.c.b16 %v245, %v241
    %v306 = vpack.c.b16 %v250, %v246
    %v307 = vpack.c.b16 %v251, %v247
    %v308 = vpack.c.b16 %v252, %v248
    %v309 = vpack.c.b16 %v253, %v249
    %v310 = vpack.c.b16 %v258, %v254
    %v311 = vpack.c.b16 %v259, %v255
    %v312 = vpack.c.b16 %v260, %v256
    %v313 = vpack.c.b16 %v261, %v257
    %v314 = vpack.c.b16 %v266, %v262
    %v315 = vpack.c.b16 %v267, %v263
    %v316 = vpack.c.b16 %v268, %v264
    %v317 = vpack.c.b16 %v269, %v265
    %v318 = vpack.c.b16 %v274, %v270
    %v319 = vpack.c.b16 %v275, %v271
    %v320 = vpack.c.b16 %v276, %v272
    %v321 = vpack.c.b16 %v277, %v273
    %v322 = vpack.c.b16 %v282, %v278
    %v323 = vpack.c.b16 %v283, %v279
    %v324 = vpack.c.b16 %v284, %v280
    %v325 = vpack.c.b16 %v285, %v281
    %v326 = vpack.c.b16 %v290, %v286
    %v327 = vpack.c.b16 %v291, %v287
    %v328 = vpack.c.b16 %v292, %v288
    %v329 = vpack.c.b16 %v293, %v289
    %v330 = vpack.c.b16 %v298, %v294
    %v331 = vpack.c.b16 %v299, %v295
    %v332 = vpack.c.b16 %v300, %v296
    %v333 = vpack.c.b16 %v301, %v297
    %366 = vmatprep.subr.bf16.mxu0 %v303
    %367 = vmatpush1.bf16.msra.mxu0 %v302
    %368 = vmatprep.subr.bf16.mxu0 %v307
    %369 = vmatpush1.bf16.msra.mxu0 %v306
    %370 = vmatprep.subr.bf16.mxu0 %v311
    %371 = vmatpush1.bf16.msra.mxu0 %v310
    %372 = vmatprep.subr.bf16.mxu0 %v315
    %373 = vmatpush1.bf16.msra.mxu0 %v314
    %374 = vmatprep.subr.bf16.mxu0 %v319
    %375 = vmatpush1.bf16.msra.mxu0 %v318
    %376 = vmatprep.subr.bf16.mxu0 %v323
    %377 = vmatpush1.bf16.msra.mxu0 %v322
    %378 = vmatprep.subr.bf16.mxu0 %v327
    %379 = vmatpush1.bf16.msra.mxu0 %v326
    %380 = vmatprep.subr.bf16.mxu0 %v331
    %381 = vmatpush1.bf16.msra.mxu0 %v330
    %382 = vmatprep.subr.bf16.mxu0 0
    %383 = vmatpush1.bf16.msra.mxu0 0
    %384 = vmatprep.subr.bf16.mxu0 0
    %385 = vmatpush1.bf16.msra.mxu0 0
    %386 = vmatprep.subr.bf16.mxu0 0
    %387 = vmatpush1.bf16.msra.mxu0 0
    %388 = vmatprep.subr.bf16.mxu0 0
    %389 = vmatpush1.bf16.msra.mxu0 0
    %390 = vmatprep.subr.bf16.mxu0 0
    %391 = vmatpush1.bf16.msra.mxu0 0
    %392 = vmatprep.subr.bf16.mxu0 0
    %393 = vmatpush1.bf16.msra.mxu0 0
    %394 = vmatprep.subr.bf16.mxu0 0
    %395 = vmatpush1.bf16.msra.mxu0 0
    %396 = vmatprep.subr.bf16.mxu0 0
    %397 = vmatpush1.bf16.msra.mxu0 0
    %398 = vmatprep.mubr.bf16.mxu0 0
    %399 = vmatmul.mubr.bf16.gmra.mrb[0].mxu0 %v198
    %v400 = vpop.f32.mrb[0].mxu0
    %v401 = vadd.f32 %v165, %v400
    %v402 = vpop.f32.mrb[0].mxu0
    %v403 = vadd.f32 %v169, %v402
    %v404 = vpop.f32.mrb[0].mxu0
    %v405 = vadd.f32 %v165, %v404
    %v406 = vpop.f32.mrb[0].mxu0
    %v407 = vadd.f32 %v169, %v406
    %408 = vmatprep.mubr.bf16.mxu0 0
    %409 = vmatmul.mubr.bf16.gmra.mrb[0].mxu0 %v199
    %v410 = vpop.f32.mrb[0].mxu0
    %v411 = vadd.f32 %v165, %v410
    %v412 = vpop.f32.mrb[0].mxu0
    %v413 = vadd.f32 %v169, %v412
    %v414 = vpop.f32.mrb[0].mxu0
    %v415 = vadd.f32 %v165, %v414
    %v416 = vpop.f32.mrb[0].mxu0
    %v417 = vadd.f32 %v169, %v416
    %418 = vmatprep.mubr.bf16.mxu0 0
    %419 = vmatmul.mubr.bf16.gmra.mrb[0].mxu0 %v200
    %v420 = vpop.f32.mrb[0].mxu0
    %v421 = vadd.f32 %v165, %v420
    %v422 = vpop.f32.mrb[0].mxu0
    %v423 = vadd.f32 %v169, %v422
    %v424 = vpop.f32.mrb[0].mxu0
    %v425 = vadd.f32 %v165, %v424
    %v426 = vpop.f32.mrb[0].mxu0
    %v427 = vadd.f32 %v169, %v426
    %428 = vmatprep.mubr.bf16.mxu0 0
    %429 = vmatmul.mubr.bf16.gmra.mrb[0].mxu0 %v201
    %v430 = vpop.f32.mrb[0].mxu0
    %v431 = vadd.f32 %v165, %v430
    %v432 = vpop.f32.mrb[0].mxu0
    %v433 = vadd.f32 %v169, %v432
    %v434 = vpop.f32.mrb[0].mxu0
    %v435 = vadd.f32 %v165, %v434
    %v436 = vpop.f32.mrb[0].mxu0
    %v437 = vadd.f32 %v169, %v436
    %438 = vdwg.mxu0
    %439 = vmatprep.subr.bf16.mxu0 %v305
    %440 = vmatpush1.bf16.msra.mxu0 %v304
    %441 = vmatprep.subr.bf16.mxu0 %v309
    %442 = vmatpush1.bf16.msra.mxu0 %v308
    %443 = vmatprep.subr.bf16.mxu0 %v313
    %444 = vmatpush1.bf16.msra.mxu0 %v312
    %445 = vmatprep.subr.bf16.mxu0 %v317
    %446 = vmatpush1.bf16.msra.mxu0 %v316
    %447 = vmatprep.subr.bf16.mxu0 %v321
    %448 = vmatpush1.bf16.msra.mxu0 %v320
    %449 = vmatprep.subr.bf16.mxu0 %v325
    %450 = vmatpush1.bf16.msra.mxu0 %v324
    %451 = vmatprep.subr.bf16.mxu0 %v329
    %452 = vmatpush1.bf16.msra.mxu0 %v328
    %453 = vmatprep.subr.bf16.mxu0 %v333
    %454 = vmatpush1.bf16.msra.mxu0 %v332
    %455 = vmatprep.subr.bf16.mxu0 0
    %456 = vmatpush1.bf16.msra.mxu0 0
    %457 = vmatprep.subr.bf16.mxu0 0
    %458 = vmatpush1.bf16.msra.mxu0 0
    %459 = vmatprep.subr.bf16.mxu0 0
    %460 = vmatpush1.bf16.msra.mxu0 0
    %461 = vmatprep.subr.bf16.mxu0 0
    %462 = vmatpush1.bf16.msra.mxu0 0
    %463 = vmatprep.subr.bf16.mxu0 0
    %464 = vmatpush1.bf16.msra.mxu0 0
    %465 = vmatprep.subr.bf16.mxu0 0
    %466 = vmatpush1.bf16.msra.mxu0 0
    %467 = vmatprep.subr.bf16.mxu0 0
    %468 = vmatpush1.bf16.msra.mxu0 0
    %469 = vmatprep.subr.bf16.mxu0 0
    %470 = vmatpush1.bf16.msra.mxu0 0
    %471 = vmatprep.mubr.bf16.mxu0 0
    %472 = vmatmul.mubr.bf16.gmra.mrb[0].mxu0 %v198
    %v473 = vpop.f32.mrb[0].mxu0
    %v474 = vadd.f32 %v173, %v473
    %v475 = vpop.f32.mrb[0].mxu0
    %v476 = vadd.f32 %v177, %v475
    %v477 = vpop.f32.mrb[0].mxu0
    %v478 = vadd.f32 %v173, %v477
    %v479 = vpop.f32.mrb[0].mxu0
    %v480 = vadd.f32 %v177, %v479
    %481 = vmatprep.mubr.bf16.mxu0 0
    %482 = vmatmul.mubr.bf16.gmra.mrb[0].mxu0 %v199
    %v483 = vpop.f32.mrb[0].mxu0
    %v484 = vadd.f32 %v173, %v483
    %v485 = vpop.f32.mrb[0].mxu0
    %v486 = vadd.f32 %v177, %v485
    %v487 = vpop.f32.mrb[0].mxu0
    %v488 = vadd.f32 %v173, %v487
    %v489 = vpop.f32.mrb[0].mxu0
    %v490 = vadd.f32 %v177, %v489
    %491 = vmatprep.mubr.bf16.mxu0 0
    %492 = vmatmul.mubr.bf16.gmra.mrb[0].mxu0 %v200
    %v493 = vpop.f32.mrb[0].mxu0
    %v494 = vadd.f32 %v173, %v493
    %v495 = vpop.f32.mrb[0].mxu0
    %v496 = vadd.f32 %v177, %v495
    %v497 = vpop.f32.mrb[0].mxu0
    %v498 = vadd.f32 %v173, %v497
    %v499 = vpop.f32.mrb[0].mxu0
    %v500 = vadd.f32 %v177, %v499
    %501 = vmatprep.mubr.bf16.mxu0 0
    %502 = vmatmul.mubr.bf16.gmra.mrb[0].mxu0 %v201
    %v503 = vpop.f32.mrb[0].mxu0
    %v504 = vadd.f32 %v173, %v503
    %v505 = vpop.f32.mrb[0].mxu0
    %v506 = vadd.f32 %v177, %v505
    %v507 = vpop.f32.mrb[0].mxu0
    %v508 = vadd.f32 %v173, %v507
    %v509 = vpop.f32.mrb[0].mxu0
    %v510 = vadd.f32 %v177, %v509
    %511 = vdwg.mxu0
    %512 = vst [vmem:[#allocation2] sm:$0xff] %v401
    %513 = vst [vmem:[#allocation2 + $0x8] sm:$0xff] %v403
    %514 = vst [vmem:[#allocation2 + $0x10] sm:$0xff] %v474
    %515 = vst [vmem:[#allocation2 + $0x18] sm:$0xff] %v476
    %516 = vst [vmem:[#allocation2 + $0x20] sm:$0xff] %v405
    %517 = vst [vmem:[#allocation2 + $0x28] sm:$0xff] %v407
    %518 = vst [vmem:[#allocation2 + $0x30] sm:$0xff] %v478
    %519 = vst [vmem:[#allocation2 + $0x38] sm:$0xff] %v480
    %520 = vst [vmem:[#allocation2 + $0x40] sm:$0xff] %v411
    %521 = vst [vmem:[#allocation2 + $0x48] sm:$0xff] %v413
    %522 = vst [vmem:[#allocation2 + $0x50] sm:$0xff] %v484
    %523 = vst [vmem:[#allocation2 + $0x58] sm:$0xff] %v486
    %524 = vst [vmem:[#allocation2 + $0x60] sm:$0xff] %v415
    %525 = vst [vmem:[#allocation2 + $0x68] sm:$0xff] %v417
    %526 = vst [vmem:[#allocation2 + $0x70] sm:$0xff] %v488
    %527 = vst [vmem:[#allocation2 + $0x78] sm:$0xff] %v490
    %528 = vst [vmem:[#allocation2 + $0x80] sm:$0xff] %v421
    %529 = vst [vmem:[#allocation2 + $0x88] sm:$0xff] %v423
    %530 = vst [vmem:[#allocation2 + $0x90] sm:$0xff] %v494
    %531 = vst [vmem:[#allocation2 + $0x98] sm:$0xff] %v496
    %532 = vst [vmem:[#allocation2 + $0xa0] sm:$0xff] %v425
    %533 = vst [vmem:[#allocation2 + $0xa8] sm:$0xff] %v427
    %534 = vst [vmem:[#allocation2 + $0xb0] sm:$0xff] %v498
    %535 = vst [vmem:[#allocation2 + $0xb8] sm:$0xff] %v500
    %536 = vst [vmem:[#allocation2 + $0xc0] sm:$0xff] %v431
    %537 = vst [vmem:[#allocation2 + $0xc8] sm:$0xff] %v433
    %538 = vst [vmem:[#allocation2 + $0xd0] sm:$0xff] %v504
    %539 = vst [vmem:[#allocation2 + $0xd8] sm:$0xff] %v506
    %540 = vst [vmem:[#allocation2 + $0xe0] sm:$0xff] %v435
    %541 = vst [vmem:[#allocation2 + $0xe8] sm:$0xff] %v437
    %542 = vst [vmem:[#allocation2 + $0xf0] sm:$0xff] %v508
    %543 = vst [vmem:[#allocation2 + $0xf8] sm:$0xff] %v510
    %v544 = vld [vmem:[#allocation3] sm:$0xf]
    %v545 = vld [vmem:[#allocation4] sm:$0xff]
    %v546 = vld [vmem:[#allocation2] sm:$0xff]
    %v547 = vld [vmem:[#allocation2 + $0x8] sm:$0xff]
    %v548 = vld [vmem:[#allocation2 + $0x10] sm:$0xff]
    %v549 = vld [vmem:[#allocation2 + $0x18] sm:$0xff]
    %v550 = vld [vmem:[#allocation11] sm:$0xff]
    %v551 = vld [vmem:[#allocation11 + $0x8] sm:$0xff]
    %v552 = vld [vmem:[#allocation11 + $0x10] sm:$0xff]
    %v553 = vld [vmem:[#allocation11 + $0x18] sm:$0xff]
    %v554 = vld [vmem:[#allocation11 + $0x20] sm:$0xff]
    %v555 = vld [vmem:[#allocation11 + $0x28] sm:$0xff]
    %v556 = vld [vmem:[#allocation11 + $0x30] sm:$0xff]
    %v557 = vld [vmem:[#allocation11 + $0x38] sm:$0xff]
    %v558 = vld [vmem:[#allocation11 + $0x40] sm:$0xff]
    %v559 = vld [vmem:[#allocation11 + $0x48] sm:$0xff]
    %v560 = vld [vmem:[#allocation11 + $0x50] sm:$0xff]
    %v561 = vld [vmem:[#allocation11 + $0x58] sm:$0xff]
    %v562 = vld [vmem:[#allocation11 + $0x60] sm:$0xff]
    %v563 = vld [vmem:[#allocation11 + $0x68] sm:$0xff]
    %v564 = vld [vmem:[#allocation11 + $0x70] sm:$0xff]
    %v565 = vld [vmem:[#allocation11 + $0x78] sm:$0xff]
    %v566 = vld [vmem:[#allocation11 + $0x80] sm:$0xff]
    %v567 = vld [vmem:[#allocation11 + $0x88] sm:$0xff]
    %v568 = vld [vmem:[#allocation11 + $0x90] sm:$0xff]
    %v569 = vld [vmem:[#allocation11 + $0x98] sm:$0xff]
    %v570 = vld [vmem:[#allocation11 + $0xa0] sm:$0xff]
    %v571 = vld [vmem:[#allocation11 + $0xa8] sm:$0xff]
    %v572 = vld [vmem:[#allocation11 + $0xb0] sm:$0xff]
    %v573 = vld [vmem:[#allocation11 + $0xb8] sm:$0xff]
    %v574 = vld [vmem:[#allocation11 + $0xc0] sm:$0xff]
    %v575 = vld [vmem:[#allocation11 + $0xc8] sm:$0xff]
    %v576 = vld [vmem:[#allocation11 + $0xd0] sm:$0xff]
    %v577 = vld [vmem:[#allocation11 + $0xd8] sm:$0xff]
    %v578 = vld [vmem:[#allocation11 + $0xe0] sm:$0xff]
    %v579 = vld [vmem:[#allocation11 + $0xe8] sm:$0xff]
    %v580 = vld [vmem:[#allocation11 + $0xf0] sm:$0xff]
    %v581 = vld [vmem:[#allocation11 + $0xf8] sm:$0xff]
    %v614 = vunpack.c.l.b16 %v550
    %v615 = vunpack.c.h.b16 %v550
    %v616 = vunpack.c.l.b16 %v551
    %v617 = vunpack.c.h.b16 %v551
    %v618 = vunpack.c.l.b16 %v552
    %v619 = vunpack.c.h.b16 %v552
    %v620 = vunpack.c.l.b16 %v553
    %v621 = vunpack.c.h.b16 %v553
    %v622 = vunpack.c.l.b16 %v554
    %v623 = vunpack.c.h.b16 %v554
    %v624 = vunpack.c.l.b16 %v555
    %v625 = vunpack.c.h.b16 %v555
    %v626 = vunpack.c.l.b16 %v556
    %v627 = vunpack.c.h.b16 %v556
    %v628 = vunpack.c.l.b16 %v557
    %v629 = vunpack.c.h.b16 %v557
    %v630 = vunpack.c.l.b16 %v558
    %v631 = vunpack.c.h.b16 %v558
    %v632 = vunpack.c.l.b16 %v559
    %v633 = vunpack.c.h.b16 %v559
    %v634 = vunpack.c.l.b16 %v560
    %v635 = vunpack.c.h.b16 %v560
    %v636 = vunpack.c.l.b16 %v561
    %v637 = vunpack.c.h.b16 %v561
    %v638 = vunpack.c.l.b16 %v562
    %v639 = vunpack.c.h.b16 %v562
    %v640 = vunpack.c.l.b16 %v563
    %v641 = vunpack.c.h.b16 %v563
    %v642 = vunpack.c.l.b16 %v564
    %v643 = vunpack.c.h.b16 %v564
    %v644 = vunpack.c.l.b16 %v565
    %v645 = vunpack.c.h.b16 %v565
    %v646 = vunpack.c.l.b16 %v566
    %v647 = vunpack.c.h.b16 %v566
    %v648 = vunpack.c.l.b16 %v567
    %v649 = vunpack.c.h.b16 %v567
    %v650 = vunpack.c.l.b16 %v568
    %v651 = vunpack.c.h.b16 %v568
    %v652 = vunpack.c.l.b16 %v569
    %v653 = vunpack.c.h.b16 %v569
    %v654 = vunpack.c.l.b16 %v570
    %v655 = vunpack.c.h.b16 %v570
    %v656 = vunpack.c.l.b16 %v571
    %v657 = vunpack.c.h.b16 %v571
    %v658 = vunpack.c.l.b16 %v572
    %v659 = vunpack.c.h.b16 %v572
    %v660 = vunpack.c.l.b16 %v573
    %v661 = vunpack.c.h.b16 %v573
    %v662 = vunpack.c.l.b16 %v574
    %v663 = vunpack.c.h.b16 %v574
    %v664 = vunpack.c.l.b16 %v575
    %v665 = vunpack.c.h.b16 %v575
    %v666 = vunpack.c.l.b16 %v576
    %v667 = vunpack.c.h.b16 %v576
    %v668 = vunpack.c.l.b16 %v577
    %v669 = vunpack.c.h.b16 %v577
    %v670 = vunpack.c.l.b16 %v578
    %v671 = vunpack.c.h.b16 %v578
    %v672 = vunpack.c.l.b16 %v579
    %v673 = vunpack.c.h.b16 %v579
    %v674 = vunpack.c.l.b16 %v580
    %v675 = vunpack.c.h.b16 %v580
    %v676 = vunpack.c.l.b16 %v581
    %v677 = vunpack.c.h.b16 %v581
    %v678 = vpack.c.b16 %v618, %v614
    %v679 = vpack.c.b16 %v619, %v615
    %v680 = vpack.c.b16 %v620, %v616
    %v681 = vpack.c.b16 %v621, %v617
    %v682 = vpack.c.b16 %v626, %v622
    %v683 = vpack.c.b16 %v627, %v623
    %v684 = vpack.c.b16 %v628, %v624
    %v685 = vpack.c.b16 %v629, %v625
    %v686 = vpack.c.b16 %v634, %v630
    %v687 = vpack.c.b16 %v635, %v631
    %v688 = vpack.c.b16 %v636, %v632
    %v689 = vpack.c.b16 %v637, %v633
    %v690 = vpack.c.b16 %v642, %v638
    %v691 = vpack.c.b16 %v643, %v639
    %v692 = vpack.c.b16 %v644, %v640
    %v693 = vpack.c.b16 %v645, %v641
    %v694 = vpack.c.b16 %v650, %v646
    %v695 = vpack.c.b16 %v651, %v647
    %v696 = vpack.c.b16 %v652, %v648
    %v697 = vpack.c.b16 %v653, %v649
    %v698 = vpack.c.b16 %v658, %v654
    %v699 = vpack.c.b16 %v659, %v655
    %v700 = vpack.c.b16 %v660, %v656
    %v701 = vpack.c.b16 %v661, %v657
    %v702 = vpack.c.b16 %v666, %v662
    %v703 = vpack.c.b16 %v667, %v663
    %v704 = vpack.c.b16 %v668, %v664
    %v705 = vpack.c.b16 %v669, %v665
    %v706 = vpack.c.b16 %v674, %v670
    %v707 = vpack.c.b16 %v675, %v671
    %v708 = vpack.c.b16 %v676, %v672
    %v709 = vpack.c.b16 %v677, %v673
    %742 = vmatprep.subr.bf16.mxu0 %v679
    %743 = vmatpush1.bf16.msra.mxu0 %v678
    %744 = vmatprep.subr.bf16.mxu0 %v683
    %745 = vmatpush1.bf16.msra.mxu0 %v682
    %746 = vmatprep.subr.bf16.mxu0 %v687
    %747 = vmatpush1.bf16.msra.mxu0 %v686
    %748 = vmatprep.subr.bf16.mxu0 %v691
    %749 = vmatpush1.bf16.msra.mxu0 %v690
    %750 = vmatprep.subr.bf16.mxu0 %v695
    %751 = vmatpush1.bf16.msra.mxu0 %v694
    %752 = vmatprep.subr.bf16.mxu0 %v699
    %753 = vmatpush1.bf16.msra.mxu0 %v698
    %754 = vmatprep.subr.bf16.mxu0 %v703
    %755 = vmatpush1.bf16.msra.mxu0 %v702
    %756 = vmatprep.subr.bf16.mxu0 %v707
    %757 = vmatpush1.bf16.msra.mxu0 %v706
    %758 = vmatprep.subr.bf16.mxu0 0
    %759 = vmatpush1.bf16.msra.mxu0 0
    %760 = vmatprep.subr.bf16.mxu0 0
    %761 = vmatpush1.bf16.msra.mxu0 0
    %762 = vmatprep.subr.bf16.mxu0 0
    %763 = vmatpush1.bf16.msra.mxu0 0
    %764 = vmatprep.subr.bf16.mxu0 0
    %765 = vmatpush1.bf16.msra.mxu0 0
    %766 = vmatprep.subr.bf16.mxu0 0
    %767 = vmatpush1.bf16.msra.mxu0 0
    %768 = vmatprep.subr.bf16.mxu0 0
    %769 = vmatpush1.bf16.msra.mxu0 0
    %770 = vmatprep.subr.bf16.mxu0 0
    %771 = vmatpush1.bf16.msra.mxu0 0
    %772 = vmatprep.subr.bf16.mxu0 0
    %773 = vmatpush1.bf16.msra.mxu0 0
    %774 = vmatprep.mubr.bf16.mxu0 0
    %775 = vmatmul.mubr.bf16.gmra.mrb[0].mxu0 %v544
    %v776 = vpop.f32.mrb[0].mxu0
    %v777 = vadd.f32 0.0, %v776
    %v778 = vpop.f32.mrb[0].mxu0
    %v779 = vadd.f32 0.0, %v778
    %v780 = vpop.f32.mrb[0].mxu0
    %v781 = vpop.f32.mrb[0].mxu0
    %782 = vdwg.mxu0
    %783 = vmatprep.subr.bf16.mxu0 %v681
    %784 = vmatpush1.bf16.msra.mxu0 %v680
    %785 = vmatprep.subr.bf16.mxu0 %v685
    %786 = vmatpush1.bf16.msra.mxu0 %v684
    %787 = vmatprep.subr.bf16.mxu0 %v689
    %788 = vmatpush1.bf16.msra.mxu0 %v688
    %789 = vmatprep.subr.bf16.mxu0 %v693
    %790 = vmatpush1.bf16.msra.mxu0 %v692
    %791 = vmatprep.subr.bf16.mxu0 %v697
    %792 = vmatpush1.bf16.msra.mxu0 %v696
    %793 = vmatprep.subr.bf16.mxu0 %v701
    %794 = vmatpush1.bf16.msra.mxu0 %v700
    %795 = vmatprep.subr.bf16.mxu0 %v705
    %796 = vmatpush1.bf16.msra.mxu0 %v704
    %797 = vmatprep.subr.bf16.mxu0 %v709
    %798 = vmatpush1.bf16.msra.mxu0 %v708
    %799 = vmatprep.subr.bf16.mxu0 0
    %800 = vmatpush1.bf16.msra.mxu0 0
    %801 = vmatprep.subr.bf16.mxu0 0
    %802 = vmatpush1.bf16.msra.mxu0 0
    %803 = vmatprep.subr.bf16.mxu0 0
    %804 = vmatpush1.bf16.msra.mxu0 0
    %805 = vmatprep.subr.bf16.mxu0 0
    %806 = vmatpush1.bf16.msra.mxu0 0
    %807 = vmatprep.subr.bf16.mxu0 0
    %808 = vmatpush1.bf16.msra.mxu0 0
    %809 = vmatprep.subr.bf16.mxu0 0
    %810 = vmatpush1.bf16.msra.mxu0 0
    %811 = vmatprep.subr.bf16.mxu0 0
    %812 = vmatpush1.bf16.msra.mxu0 0
    %813 = vmatprep.subr.bf16.mxu0 0
    %814 = vmatpush1.bf16.msra.mxu0 0
    %815 = vmatprep.mubr.bf16.mxu0 0
    %816 = vmatmul.mubr.bf16.gmra.mrb[0].mxu0 %v544
    %v817 = vpop.f32.mrb[0].mxu0
    %v818 = vadd.f32 0.0, %v817
    %v819 = vpop.f32.mrb[0].mxu0
    %v820 = vadd.f32 0.0, %v819
    %v821 = vpop.f32.mrb[0].mxu0
    %v822 = vpop.f32.mrb[0].mxu0
    %823 = vdwg.mxu0
    %v824 = vadd.f32 %v546, %v777
    %v825 = vadd.f32 %v547, %v779
    %v826 = vadd.f32 %v548, %v818
    %v827 = vadd.f32 %v549, %v820
    %v828 = vmul.f32 %v824, 0.5
    %v829 = vtanh.pop %v828
    %v830 = vmul.f32 %v829, 0.5
    %v831 = vadd.f32 %v830, 0.5
    %v832 = vmul.f32 %v825, 0.5
    %v833 = vtanh.pop %v832
    %v834 = vmul.f32 %v833, 0.5
    %v835 = vadd.f32 %v834, 0.5
    %v836 = vtanh.pop %v826
    %v837 = vmul.f32 %v827, 0.5
    %v838 = vtanh.pop %v837
    %v839 = vmul.f32 %v838, 0.5
    %v840 = vadd.f32 %v839, 0.5
    %v841 = vmul.f32 %v835, %v545
    %v842 = vmul.f32 %v831, %v836
    %v843 = vadd.f32 %v841, %v842
    %v844 = vtanh.pop %v843
    %v845 = vmul.f32 %v840, %v844
    %v846 = vpack.c.bf16 %v845, %v845
    %s847 = scalar_lea.vmem [#allocation2], 32
    %v848 = vld [vmem:[%s847] sm:$0xff]
    %v849 = vld [vmem:[%s847 + $0x8] sm:$0xff]
    %v850 = vld [vmem:[%s847 + $0x10] sm:$0xff]
    %v851 = vld [vmem:[%s847 + $0x18] sm:$0xff]
    %852 = vmatprep.subr.bf16.mxu0 %v679
    %853 = vmatpush1.bf16.msra.mxu0 %v678
    %854 = vmatprep.subr.bf16.mxu0 %v683
    %855 = vmatpush1.bf16.msra.mxu0 %v682
    %856 = vmatprep.subr.bf16.mxu0 %v687
    %857 = vmatpush1.bf16.msra.mxu0 %v686
    %858 = vmatprep.subr.bf16.mxu0 %v691
    %859 = vmatpush1.bf16.msra.mxu0 %v690
    %860 = vmatprep.subr.bf16.mxu0 %v695
    %861 = vmatpush1.bf16.msra.mxu0 %v694
    %862 = vmatprep.subr.bf16.mxu0 %v699
    %863 = vmatpush1.bf16.msra.mxu0 %v698
    %864 = vmatprep.subr.bf16.mxu0 %v703
    %865 = vmatpush1.bf16.msra.mxu0 %v702
    %866 = vmatprep.subr.bf16.mxu0 %v707
    %867 = vmatpush1.bf16.msra.mxu0 %v706
    %868 = vmatprep.subr.bf16.mxu0 0
    %869 = vmatpush1.bf16.msra.mxu0 0
    %870 = vmatprep.subr.bf16.mxu0 0
    %871 = vmatpush1.bf16.msra.mxu0 0
    %872 = vmatprep.subr.bf16.mxu0 0
    %873 = vmatpush1.bf16.msra.mxu0 0
    %874 = vmatprep.subr.bf16.mxu0 0
    %875 = vmatpush1.bf16.msra.mxu0 0
    %876 = vmatprep.subr.bf16.mxu0 0
    %877 = vmatpush1.bf16.msra.mxu0 0
    %878 = vmatprep.subr.bf16.mxu0 0
    %879 = vmatpush1.bf16.msra.mxu0 0
    %880 = vmatprep.subr.bf16.mxu0 0
    %881 = vmatpush1.bf16.msra.mxu0 0
    %882 = vmatprep.subr.bf16.mxu0 0
    %883 = vmatpush1.bf16.msra.mxu0 0
    %884 = vmatprep.mubr.bf16.mxu0 0
    %885 = vmatmul.mubr.bf16.gmra.mrb[0].mxu0 %v846
    %v886 = vpop.f32.mrb[0].mxu0
    %v887 = vadd.f32 0.0, %v886
    %v888 = vpop.f32.mrb[0].mxu0
    %v889 = vadd.f32 0.0, %v888
    %v890 = vpop.f32.mrb[0].mxu0
    %v891 = vpop.f32.mrb[0].mxu0
    %892 = vdwg.mxu0
    %893 = vmatprep.subr.bf16.mxu0 %v681
    %894 = vmatpush1.bf16.msra.mxu0 %v680
    %895 = vmatprep.subr.bf16.mxu0 %v685
    %896 = vmatpush1.bf16.msra.mxu0 %v684
    %897 = vmatprep.subr.bf16.mxu0 %v689
    %898 = vmatpush1.bf16.msra.mxu0 %v688
    %899 = vmatprep.subr.bf16.mxu0 %v693
    %900 = vmatpush1.bf16.msra.mxu0 %v692
    %901 = vmatprep.subr.bf16.mxu0 %v697
    %902 = vmatpush1.bf16.msra.mxu0 %v696
    %903 = vmatprep.subr.bf16.mxu0 %v701
    %904 = vmatpush1.bf16.msra.mxu0 %v700
    %905 = vmatprep.subr.bf16.mxu0 %v705
    %906 = vmatpush1.bf16.msra.mxu0 %v704
    %907 = vmatprep.subr.bf16.mxu0 %v709
    %908 = vmatpush1.bf16.msra.mxu0 %v708
    %909 = vmatprep.subr.bf16.mxu0 0
    %910 = vmatpush1.bf16.msra.mxu0 0
    %911 = vmatprep.subr.bf16.mxu0 0
    %912 = vmatpush1.bf16.msra.mxu0 0
    %913 = vmatprep.subr.bf16.mxu0 0
    %914 = vmatpush1.bf16.msra.mxu0 0
    %915 = vmatprep.subr.bf16.mxu0 0
    %916 = vmatpush1.bf16.msra.mxu0 0
    %917 = vmatprep.subr.bf16.mxu0 0
    %918 = vmatpush1.bf16.msra.mxu0 0
    %919 = vmatprep.subr.bf16.mxu0 0
    %920 = vmatpush1.bf16.msra.mxu0 0
    %921 = vmatprep.subr.bf16.mxu0 0
    %922 = vmatpush1.bf16.msra.mxu0 0
    %923 = vmatprep.subr.bf16.mxu0 0
    %924 = vmatpush1.bf16.msra.mxu0 0
    %925 = vmatprep.mubr.bf16.mxu0 0
    %926 = vmatmul.mubr.bf16.gmra.mrb[0].mxu0 %v846
    %v927 = vpop.f32.mrb[0].mxu0
    %v928 = vadd.f32 0.0, %v927
    %v929 = vpop.f32.mrb[0].mxu0
    %v930 = vadd.f32 0.0, %v929
    %v931 = vpop.f32.mrb[0].mxu0
    %v932 = vpop.f32.mrb[0].mxu0
    %933 = vdwg.mxu0
    %v934 = vadd.f32 %v848, %v887
    %v935 = vadd.f32 %v849, %v889
    %v936 = vadd.f32 %v850, %v928
    %v937 = vadd.f32 %v851, %v930
    %v938 = vmul.f32 %v934, 0.5
    %v939 = vtanh.pop %v938
    %v940 = vmul.f32 %v939, 0.5
    %v941 = vadd.f32 %v940, 0.5
    %v942 = vmul.f32 %v935, 0.5
    %v943 = vtanh.pop %v942
    %v944 = vmul.f32 %v943, 0.5
    %v945 = vadd.f32 %v944, 0.5
    %v946 = vtanh.pop %v936
    %v947 = vmul.f32 %v937, 0.5
    %v948 = vtanh.pop %v947
    %v949 = vmul.f32 %v948, 0.5
    %v950 = vadd.f32 %v949, 0.5
    %v951 = vmul.f32 %v945, %v843
    %v952 = vmul.f32 %v941, %v946
    %v953 = vadd.f32 %v951, %v952
    %v954 = vtanh.pop %v953
    %v955 = vmul.f32 %v950, %v954
    %v956 = vpack.c.bf16 %v955, %v955
    %s957 = scalar_lea.vmem [#allocation2], 64
    %v958 = vld [vmem:[%s957] sm:$0xff]
    %v959 = vld [vmem:[%s957 + $0x8] sm:$0xff]
    %v960 = vld [vmem:[%s957 + $0x10] sm:$0xff]
    %v961 = vld [vmem:[%s957 + $0x18] sm:$0xff]
    %962 = vmatprep.subr.bf16.mxu0 %v679
    %963 = vmatpush1.bf16.msra.mxu0 %v678
    %964 = vmatprep.subr.bf16.mxu0 %v683
    %965 = vmatpush1.bf16.msra.mxu0 %v682
    %966 = vmatprep.subr.bf16.mxu0 %v687
    %967 = vmatpush1.bf16.msra.mxu0 %v686
    %968 = vmatprep.subr.bf16.mxu0 %v691
    %969 = vmatpush1.bf16.msra.mxu0 %v690
    %970 = vmatprep.subr.bf16.mxu0 %v695
    %971 = vmatpush1.bf16.msra.mxu0 %v694
    %972 = vmatprep.subr.bf16.mxu0 %v699
    %973 = vmatpush1.bf16.msra.mxu0 %v698
    %974 = vmatprep.subr.bf16.mxu0 %v703
    %975 = vmatpush1.bf16.msra.mxu0 %v702
    %976 = vmatprep.subr.bf16.mxu0 %v707
    %977 = vmatpush1.bf16.msra.mxu0 %v706
    %978 = vmatprep.subr.bf16.mxu0 0
    %979 = vmatpush1.bf16.msra.mxu0 0
    %980 = vmatprep.subr.bf16.mxu0 0
    %981 = vmatpush1.bf16.msra.mxu0 0
    %982 = vmatprep.subr.bf16.mxu0 0
    %983 = vmatpush1.bf16.msra.mxu0 0
    %984 = vmatprep.subr.bf16.mxu0 0
    %985 = vmatpush1.bf16.msra.mxu0 0
    %986 = vmatprep.subr.bf16.mxu0 0
    %987 = vmatpush1.bf16.msra.mxu0 0
    %988 = vmatprep.subr.bf16.mxu0 0
    %989 = vmatpush1.bf16.msra.mxu0 0
    %990 = vmatprep.subr.bf16.mxu0 0
    %991 = vmatpush1.bf16.msra.mxu0 0
    %992 = vmatprep.subr.bf16.mxu0 0
    %993 = vmatpush1.bf16.msra.mxu0 0
    %994 = vmatprep.mubr.bf16.mxu0 0
    %995 = vmatmul.mubr.bf16.gmra.mrb[0].mxu0 %v956
    %v996 = vpop.f32.mrb[0].mxu0
    %v997 = vadd.f32 0.0, %v996
    %v998 = vpop.f32.mrb[0].mxu0
    %v999 = vadd.f32 0.0, %v998
    %v1000 = vpop.f32.mrb[0].mxu0
    %v1001 = vpop.f32.mrb[0].mxu0
    %1002 = vdwg.mxu0
    %1003 = vmatprep.subr.bf16.mxu0 %v681
    %1004 = vmatpush1.bf16.msra.mxu0 %v680
    %1005 = vmatprep.subr.bf16.mxu0 %v685
    %1006 = vmatpush1.bf16.msra.mxu0 %v684
    %1007 = vmatprep.subr.bf16.mxu0 %v689
    %1008 = vmatpush1.bf16.msra.mxu0 %v688
    %1009 = vmatprep.subr.bf16.mxu0 %v693
    %1010 = vmatpush1.bf16.msra.mxu0 %v692
    %1011 = vmatprep.subr.bf16.mxu0 %v697
    %1012 = vmatpush1.bf16.msra.mxu0 %v696
    %1013 = vmatprep.subr.bf16.mxu0 %v701
    %1014 = vmatpush1.bf16.msra.mxu0 %v700
    %1015 = vmatprep.subr.bf16.mxu0 %v705
    %1016 = vmatpush1.bf16.msra.mxu0 %v704
    %1017 = vmatprep.subr.bf16.mxu0 %v709
    %1018 = vmatpush1.bf16.msra.mxu0 %v708
    %1019 = vmatprep.subr.bf16.mxu0 0
    %1020 = vmatpush1.bf16.msra.mxu0 0
    %1021 = vmatprep.subr.bf16.mxu0 0
    %1022 = vmatpush1.bf16.msra.mxu0 0
    %1023 = vmatprep.subr.bf16.mxu0 0
    %1024 = vmatpush1.bf16.msra.mxu0 0
    %1025 = vmatprep.subr.bf16.mxu0 0
    %1026 = vmatpush1.bf16.msra.mxu0 0
    %1027 = vmatprep.subr.bf16.mxu0 0
    %1028 = vmatpush1.bf16.msra.mxu0 0
    %1029 = vmatprep.subr.bf16.mxu0 0
    %1030 = vmatpush1.bf16.msra.mxu0 0
    %1031 = vmatprep.subr.bf16.mxu0 0
    %1032 = vmatpush1.bf16.msra.mxu0 0
    %1033 = vmatprep.subr.bf16.mxu0 0
    %1034 = vmatpush1.bf16.msra.mxu0 0
    %1035 = vmatprep.mubr.bf16.mxu0 0
    %1036 = vmatmul.mubr.bf16.gmra.mrb[0].mxu0 %v956
    %v1037 = vpop.f32.mrb[0].mxu0
    %v1038 = vadd.f32 0.0, %v1037
    %v1039 = vpop.f32.mrb[0].mxu0
    %v1040 = vadd.f32 0.0, %v1039
    %v1041 = vpop.f32.mrb[0].mxu0
    %v1042 = vpop.f32.mrb[0].mxu0
    %1043 = vdwg.mxu0
    %v1044 = vadd.f32 %v958, %v997
    %v1045 = vadd.f32 %v959, %v999
    %v1046 = vadd.f32 %v960, %v1038
    %v1047 = vadd.f32 %v961, %v1040
    %v1048 = vmul.f32 %v1044, 0.5
    %v1049 = vtanh.pop %v1048
    %v1050 = vmul.f32 %v1049, 0.5
    %v1051 = vadd.f32 %v1050, 0.5
    %v1052 = vmul.f32 %v1045, 0.5
    %v1053 = vtanh.pop %v1052
    %v1054 = vmul.f32 %v1053, 0.5
    %v1055 = vadd.f32 %v1054, 0.5
    %v1056 = vtanh.pop %v1046
    %v1057 = vmul.f32 %v1047, 0.5
    %v1058 = vtanh.pop %v1057
    %v1059 = vmul.f32 %v1058, 0.5
    %v1060 = vadd.f32 %v1059, 0.5
    %v1061 = vmul.f32 %v1055, %v953
    %v1062 = vmul.f32 %v1051, %v1056
    %v1063 = vadd.f32 %v1061, %v1062
    %v1064 = vtanh.pop %v1063
    %v1065 = vmul.f32 %v1060, %v1064
    %v1066 = vpack.c.bf16 %v1065, %v1065
    %s1067 = scalar_lea.vmem [#allocation2], 96
    %v1068 = vld [vmem:[%s1067] sm:$0xff]
    %v1069 = vld [vmem:[%s1067 + $0x8] sm:$0xff]
    %v1070 = vld [vmem:[%s1067 + $0x10] sm:$0xff]
    %v1071 = vld [vmem:[%s1067 + $0x18] sm:$0xff]
    %1072 = vmatprep.subr.bf16.mxu0 %v679
    %1073 = vmatpush1.bf16.msra.mxu0 %v678
    %1074 = vmatprep.subr.bf16.mxu0 %v683
    %1075 = vmatpush1.bf16.msra.mxu0 %v682
    %1076 = vmatprep.subr.bf16.mxu0 %v687
    %1077 = vmatpush1.bf16.msra.mxu0 %v686
    %1078 = vmatprep.subr.bf16.mxu0 %v691
    %1079 = vmatpush1.bf16.msra.mxu0 %v690
    %1080 = vmatprep.subr.bf16.mxu0 %v695
    %1081 = vmatpush1.bf16.msra.mxu0 %v694
    %1082 = vmatprep.subr.bf16.mxu0 %v699
    %1083 = vmatpush1.bf16.msra.mxu0 %v698
    %1084 = vmatprep.subr.bf16.mxu0 %v703
    %1085 = vmatpush1.bf16.msra.mxu0 %v702
    %1086 = vmatprep.subr.bf16.mxu0 %v707
    %1087 = vmatpush1.bf16.msra.mxu0 %v706
    %1088 = vmatprep.subr.bf16.mxu0 0
    %1089 = vmatpush1.bf16.msra.mxu0 0
    %1090 = vmatprep.subr.bf16.mxu0 0
    %1091 = vmatpush1.bf16.msra.mxu0 0
    %1092 = vmatprep.subr.bf16.mxu0 0
    %1093 = vmatpush1.bf16.msra.mxu0 0
    %1094 = vmatprep.subr.bf16.mxu0 0
    %1095 = vmatpush1.bf16.msra.mxu0 0
    %1096 = vmatprep.subr.bf16.mxu0 0
    %1097 = vmatpush1.bf16.msra.mxu0 0
    %1098 = vmatprep.subr.bf16.mxu0 0
    %1099 = vmatpush1.bf16.msra.mxu0 0
    %1100 = vmatprep.subr.bf16.mxu0 0
    %1101 = vmatpush1.bf16.msra.mxu0 0
    %1102 = vmatprep.subr.bf16.mxu0 0
    %1103 = vmatpush1.bf16.msra.mxu0 0
    %1104 = vmatprep.mubr.bf16.mxu0 0
    %1105 = vmatmul.mubr.bf16.gmra.mrb[0].mxu0 %v1066
    %v1106 = vpop.f32.mrb[0].mxu0
    %v1107 = vadd.f32 0.0, %v1106
    %v1108 = vpop.f32.mrb[0].mxu0
    %v1109 = vadd.f32 0.0, %v1108
    %v1110 = vpop.f32.mrb[0].mxu0
    %v1111 = vpop.f32.mrb[0].mxu0
    %1112 = vdwg.mxu0
    %1113 = vmatprep.subr.bf16.mxu0 %v681
    %1114 = vmatpush1.bf16.msra.mxu0 %v680
    %1115 = vmatprep.subr.bf16.mxu0 %v685
    %1116 = vmatpush1.bf16.msra.mxu0 %v684
    %1117 = vmatprep.subr.bf16.mxu0 %v689
    %1118 = vmatpush1.bf16.msra.mxu0 %v688
    %1119 = vmatprep.subr.bf16.mxu0 %v693
    %1120 = vmatpush1.bf16.msra.mxu0 %v692
    %1121 = vmatprep.subr.bf16.mxu0 %v697
    %1122 = vmatpush1.bf16.msra.mxu0 %v696
    %1123 = vmatprep.subr.bf16.mxu0 %v701
    %1124 = vmatpush1.bf16.msra.mxu0 %v700
    %1125 = vmatprep.subr.bf16.mxu0 %v705
    %1126 = vmatpush1.bf16.msra.mxu0 %v704
    %1127 = vmatprep.subr.bf16.mxu0 %v709
    %1128 = vmatpush1.bf16.msra.mxu0 %v708
    %1129 = vmatprep.subr.bf16.mxu0 0
    %1130 = vmatpush1.bf16.msra.mxu0 0
    %1131 = vmatprep.subr.bf16.mxu0 0
    %1132 = vmatpush1.bf16.msra.mxu0 0
    %1133 = vmatprep.subr.bf16.mxu0 0
    %1134 = vmatpush1.bf16.msra.mxu0 0
    %1135 = vmatprep.subr.bf16.mxu0 0
    %1136 = vmatpush1.bf16.msra.mxu0 0
    %1137 = vmatprep.subr.bf16.mxu0 0
    %1138 = vmatpush1.bf16.msra.mxu0 0
    %1139 = vmatprep.subr.bf16.mxu0 0
    %1140 = vmatpush1.bf16.msra.mxu0 0
    %1141 = vmatprep.subr.bf16.mxu0 0
    %1142 = vmatpush1.bf16.msra.mxu0 0
    %1143 = vmatprep.subr.bf16.mxu0 0
    %1144 = vmatpush1.bf16.msra.mxu0 0
    %1145 = vmatprep.mubr.bf16.mxu0 0
    %1146 = vmatmul.mubr.bf16.gmra.mrb[0].mxu0 %v1066
    %v1147 = vpop.f32.mrb[0].mxu0
    %v1148 = vadd.f32 0.0, %v1147
    %v1149 = vpop.f32.mrb[0].mxu0
    %v1150 = vadd.f32 0.0, %v1149
    %v1151 = vpop.f32.mrb[0].mxu0
    %v1152 = vpop.f32.mrb[0].mxu0
    %1153 = vdwg.mxu0
    %v1154 = vadd.f32 %v1068, %v1107
    %v1155 = vadd.f32 %v1069, %v1109
    %v1156 = vadd.f32 %v1070, %v1148
    %v1157 = vadd.f32 %v1071, %v1150
    %v1158 = vmul.f32 %v1154, 0.5
    %v1159 = vtanh.pop %v1158
    %v1160 = vmul.f32 %v1159, 0.5
    %v1161 = vadd.f32 %v1160, 0.5
    %v1162 = vmul.f32 %v1155, 0.5
    %v1163 = vtanh.pop %v1162
    %v1164 = vmul.f32 %v1163, 0.5
    %v1165 = vadd.f32 %v1164, 0.5
    %v1166 = vtanh.pop %v1156
    %v1167 = vmul.f32 %v1157, 0.5
    %v1168 = vtanh.pop %v1167
    %v1169 = vmul.f32 %v1168, 0.5
    %v1170 = vadd.f32 %v1169, 0.5
    %v1171 = vmul.f32 %v1165, %v1063
    %v1172 = vmul.f32 %v1161, %v1166
    %v1173 = vadd.f32 %v1171, %v1172
    %v1174 = vtanh.pop %v1173
    %v1175 = vmul.f32 %v1170, %v1174
    %v1176 = vpack.c.bf16 %v1175, %v1175
    %s1177 = scalar_lea.vmem [#allocation2], 128
    %v1178 = vld [vmem:[%s1177] sm:$0xff]
    %v1179 = vld [vmem:[%s1177 + $0x8] sm:$0xff]
    %v1180 = vld [vmem:[%s1177 + $0x10] sm:$0xff]
    %v1181 = vld [vmem:[%s1177 + $0x18] sm:$0xff]
    %1182 = vmatprep.subr.bf16.mxu0 %v679
    %1183 = vmatpush1.bf16.msra.mxu0 %v678
    %1184 = vmatprep.subr.bf16.mxu0 %v683
    %1185 = vmatpush1.bf16.msra.mxu0 %v682
    %1186 = vmatprep.subr.bf16.mxu0 %v687
    %1187 = vmatpush1.bf16.msra.mxu0 %v686
    %1188 = vmatprep.subr.bf16.mxu0 %v691
    %1189 = vmatpush1.bf16.msra.mxu0 %v690
    %1190 = vmatprep.subr.bf16.mxu0 %v695
    %1191 = vmatpush1.bf16.msra.mxu0 %v694
    %1192 = vmatprep.subr.bf16.mxu0 %v699
    %1193 = vmatpush1.bf16.msra.mxu0 %v698
    %1194 = vmatprep.subr.bf16.mxu0 %v703
    %1195 = vmatpush1.bf16.msra.mxu0 %v702
    %1196 = vmatprep.subr.bf16.mxu0 %v707
    %1197 = vmatpush1.bf16.msra.mxu0 %v706
    %1198 = vmatprep.subr.bf16.mxu0 0
    %1199 = vmatpush1.bf16.msra.mxu0 0
    %1200 = vmatprep.subr.bf16.mxu0 0
    %1201 = vmatpush1.bf16.msra.mxu0 0
    %1202 = vmatprep.subr.bf16.mxu0 0
    %1203 = vmatpush1.bf16.msra.mxu0 0
    %1204 = vmatprep.subr.bf16.mxu0 0
    %1205 = vmatpush1.bf16.msra.mxu0 0
    %1206 = vmatprep.subr.bf16.mxu0 0
    %1207 = vmatpush1.bf16.msra.mxu0 0
    %1208 = vmatprep.subr.bf16.mxu0 0
    %1209 = vmatpush1.bf16.msra.mxu0 0
    %1210 = vmatprep.subr.bf16.mxu0 0
    %1211 = vmatpush1.bf16.msra.mxu0 0
    %1212 = vmatprep.subr.bf16.mxu0 0
    %1213 = vmatpush1.bf16.msra.mxu0 0
    %1214 = vmatprep.mubr.bf16.mxu0 0
    %1215 = vmatmul.mubr.bf16.gmra.mrb[0].mxu0 %v1176
    %v1216 = vpop.f32.mrb[0].mxu0
    %v1217 = vadd.f32 0.0, %v1216
    %v1218 = vpop.f32.mrb[0].mxu0
    %v1219 = vadd.f32 0.0, %v1218
    %v1220 = vpop.f32.mrb[0].mxu0
    %v1221 = vpop.f32.mrb[0].mxu0
    %1222 = vdwg.mxu0
    %1223 = vmatprep.subr.bf16.mxu0 %v681
    %1224 = vmatpush1.bf16.msra.mxu0 %v680
    %1225 = vmatprep.subr.bf16.mxu0 %v685
    %1226 = vmatpush1.bf16.msra.mxu0 %v684
    %1227 = vmatprep.subr.bf16.mxu0 %v689
    %1228 = vmatpush1.bf16.msra.mxu0 %v688
    %1229 = vmatprep.subr.bf16.mxu0 %v693
    %1230 = vmatpush1.bf16.msra.mxu0 %v692
    %1231 = vmatprep.subr.bf16.mxu0 %v697
    %1232 = vmatpush1.bf16.msra.mxu0 %v696
    %1233 = vmatprep.subr.bf16.mxu0 %v701
    %1234 = vmatpush1.bf16.msra.mxu0 %v700
    %1235 = vmatprep.subr.bf16.mxu0 %v705
    %1236 = vmatpush1.bf16.msra.mxu0 %v704
    %1237 = vmatprep.subr.bf16.mxu0 %v709
    %1238 = vmatpush1.bf16.msra.mxu0 %v708
    %1239 = vmatprep.subr.bf16.mxu0 0
    %1240 = vmatpush1.bf16.msra.mxu0 0
    %1241 = vmatprep.subr.bf16.mxu0 0
    %1242 = vmatpush1.bf16.msra.mxu0 0
    %1243 = vmatprep.subr.bf16.mxu0 0
    %1244 = vmatpush1.bf16.msra.mxu0 0
    %1245 = vmatprep.subr.bf16.mxu0 0
    %1246 = vmatpush1.bf16.msra.mxu0 0
    %1247 = vmatprep.subr.bf16.mxu0 0
    %1248 = vmatpush1.bf16.msra.mxu0 0
    %1249 = vmatprep.subr.bf16.mxu0 0
    %1250 = vmatpush1.bf16.msra.mxu0 0
    %1251 = vmatprep.subr.bf16.mxu0 0
    %1252 = vmatpush1.bf16.msra.mxu0 0
    %1253 = vmatprep.subr.bf16.mxu0 0
    %1254 = vmatpush1.bf16.msra.mxu0 0
    %1255 = vmatprep.mubr.bf16.mxu0 0
    %1256 = vmatmul.mubr.bf16.gmra.mrb[0].mxu0 %v1176
    %v1257 = vpop.f32.mrb[0].mxu0
    %v1258 = vadd.f32 0.0, %v1257
    %v1259 = vpop.f32.mrb[0].mxu0
    %v1260 = vadd.f32 0.0, %v1259
    %v1261 = vpop.f32.mrb[0].mxu0
    %v1262 = vpop.f32.mrb[0].mxu0
    %1263 = vdwg.mxu0
    %v1264 = vadd.f32 %v1178, %v1217
    %v1265 = vadd.f32 %v1179, %v1219
    %v1266 = vadd.f32 %v1180, %v1258
    %v1267 = vadd.f32 %v1181, %v1260
    %v1268 = vmul.f32 %v1264, 0.5
    %v1269 = vtanh.pop %v1268
    %v1270 = vmul.f32 %v1269, 0.5
    %v1271 = vadd.f32 %v1270, 0.5
    %v1272 = vmul.f32 %v1265, 0.5
    %v1273 = vtanh.pop %v1272
    %v1274 = vmul.f32 %v1273, 0.5
    %v1275 = vadd.f32 %v1274, 0.5
    %v1276 = vtanh.pop %v1266
    %v1277 = vmul.f32 %v1267, 0.5
    %v1278 = vtanh.pop %v1277
    %v1279 = vmul.f32 %v1278, 0.5
    %v1280 = vadd.f32 %v1279, 0.5
    %v1281 = vmul.f32 %v1275, %v1173
    %v1282 = vmul.f32 %v1271, %v1276
    %v1283 = vadd.f32 %v1281, %v1282
    %v1284 = vtanh.pop %v1283
    %v1285 = vmul.f32 %v1280, %v1284
    %v1286 = vpack.c.bf16 %v1285, %v1285
    %s1287 = scalar_lea.vmem [#allocation2], 160
    %v1288 = vld [vmem:[%s1287] sm:$0xff]
    %v1289 = vld [vmem:[%s1287 + $0x8] sm:$0xff]
    %v1290 = vld [vmem:[%s1287 + $0x10] sm:$0xff]
    %v1291 = vld [vmem:[%s1287 + $0x18] sm:$0xff]
    %1292 = vmatprep.subr.bf16.mxu0 %v679
    %1293 = vmatpush1.bf16.msra.mxu0 %v678
    %1294 = vmatprep.subr.bf16.mxu0 %v683
    %1295 = vmatpush1.bf16.msra.mxu0 %v682
    %1296 = vmatprep.subr.bf16.mxu0 %v687
    %1297 = vmatpush1.bf16.msra.mxu0 %v686
    %1298 = vmatprep.subr.bf16.mxu0 %v691
    %1299 = vmatpush1.bf16.msra.mxu0 %v690
    %1300 = vmatprep.subr.bf16.mxu0 %v695
    %1301 = vmatpush1.bf16.msra.mxu0 %v694
    %1302 = vmatprep.subr.bf16.mxu0 %v699
    %1303 = vmatpush1.bf16.msra.mxu0 %v698
    %1304 = vmatprep.subr.bf16.mxu0 %v703
    %1305 = vmatpush1.bf16.msra.mxu0 %v702
    %1306 = vmatprep.subr.bf16.mxu0 %v707
    %1307 = vmatpush1.bf16.msra.mxu0 %v706
    %1308 = vmatprep.subr.bf16.mxu0 0
    %1309 = vmatpush1.bf16.msra.mxu0 0
    %1310 = vmatprep.subr.bf16.mxu0 0
    %1311 = vmatpush1.bf16.msra.mxu0 0
    %1312 = vmatprep.subr.bf16.mxu0 0
    %1313 = vmatpush1.bf16.msra.mxu0 0
    %1314 = vmatprep.subr.bf16.mxu0 0
    %1315 = vmatpush1.bf16.msra.mxu0 0
    %1316 = vmatprep.subr.bf16.mxu0 0
    %1317 = vmatpush1.bf16.msra.mxu0 0
    %1318 = vmatprep.subr.bf16.mxu0 0
    %1319 = vmatpush1.bf16.msra.mxu0 0
    %1320 = vmatprep.subr.bf16.mxu0 0
    %1321 = vmatpush1.bf16.msra.mxu0 0
    %1322 = vmatprep.subr.bf16.mxu0 0
    %1323 = vmatpush1.bf16.msra.mxu0 0
    %1324 = vmatprep.mubr.bf16.mxu0 0
    %1325 = vmatmul.mubr.bf16.gmra.mrb[0].mxu0 %v1286
    %v1326 = vpop.f32.mrb[0].mxu0
    %v1327 = vadd.f32 0.0, %v1326
    %v1328 = vpop.f32.mrb[0].mxu0
    %v1329 = vadd.f32 0.0, %v1328
    %v1330 = vpop.f32.mrb[0].mxu0
    %v1331 = vpop.f32.mrb[0].mxu0
    %1332 = vdwg.mxu0
    %1333 = vmatprep.subr.bf16.mxu0 %v681
    %1334 = vmatpush1.bf16.msra.mxu0 %v680
    %1335 = vmatprep.subr.bf16.mxu0 %v685
    %1336 = vmatpush1.bf16.msra.mxu0 %v684
    %1337 = vmatprep.subr.bf16.mxu0 %v689
    %1338 = vmatpush1.bf16.msra.mxu0 %v688
    %1339 = vmatprep.subr.bf16.mxu0 %v693
    %1340 = vmatpush1.bf16.msra.mxu0 %v692
    %1341 = vmatprep.subr.bf16.mxu0 %v697
    %1342 = vmatpush1.bf16.msra.mxu0 %v696
    %1343 = vmatprep.subr.bf16.mxu0 %v701
    %1344 = vmatpush1.bf16.msra.mxu0 %v700
    %1345 = vmatprep.subr.bf16.mxu0 %v705
    %1346 = vmatpush1.bf16.msra.mxu0 %v704
    %1347 = vmatprep.subr.bf16.mxu0 %v709
    %1348 = vmatpush1.bf16.msra.mxu0 %v708
    %1349 = vmatprep.subr.bf16.mxu0 0
    %1350 = vmatpush1.bf16.msra.mxu0 0
    %1351 = vmatprep.subr.bf16.mxu0 0
    %1352 = vmatpush1.bf16.msra.mxu0 0
    %1353 = vmatprep.subr.bf16.mxu0 0
    %1354 = vmatpush1.bf16.msra.mxu0 0
    %1355 = vmatprep.subr.bf16.mxu0 0
    %1356 = vmatpush1.bf16.msra.mxu0 0
    %1357 = vmatprep.subr.bf16.mxu0 0
    %1358 = vmatpush1.bf16.msra.mxu0 0
    %1359 = vmatprep.subr.bf16.mxu0 0
    %1360 = vmatpush1.bf16.msra.mxu0 0
    %1361 = vmatprep.subr.bf16.mxu0 0
    %1362 = vmatpush1.bf16.msra.mxu0 0
    %1363 = vmatprep.subr.bf16.mxu0 0
    %1364 = vmatpush1.bf16.msra.mxu0 0
    %1365 = vmatprep.mubr.bf16.mxu0 0
    %1366 = vmatmul.mubr.bf16.gmra.mrb[0].mxu0 %v1286
    %v1367 = vpop.f32.mrb[0].mxu0
    %v1368 = vadd.f32 0.0, %v1367
    %v1369 = vpop.f32.mrb[0].mxu0
    %v1370 = vadd.f32 0.0, %v1369
    %v1371 = vpop.f32.mrb[0].mxu0
    %v1372 = vpop.f32.mrb[0].mxu0
    %1373 = vdwg.mxu0
    %v1374 = vadd.f32 %v1288, %v1327
    %v1375 = vadd.f32 %v1289, %v1329
    %v1376 = vadd.f32 %v1290, %v1368
    %v1377 = vadd.f32 %v1291, %v1370
    %v1378 = vmul.f32 %v1374, 0.5
    %v1379 = vtanh.pop %v1378
    %v1380 = vmul.f32 %v1379, 0.5
    %v1381 = vadd.f32 %v1380, 0.5
    %v1382 = vmul.f32 %v1375, 0.5
    %v1383 = vtanh.pop %v1382
    %v1384 = vmul.f32 %v1383, 0.5
    %v1385 = vadd.f32 %v1384, 0.5
    %v1386 = vtanh.pop %v1376
    %v1387 = vmul.f32 %v1377, 0.5
    %v1388 = vtanh.pop %v1387
    %v1389 = vmul.f32 %v1388, 0.5
    %v1390 = vadd.f32 %v1389, 0.5
    %v1391 = vmul.f32 %v1385, %v1283
    %v1392 = vmul.f32 %v1381, %v1386
    %v1393 = vadd.f32 %v1391, %v1392
    %v1394 = vtanh.pop %v1393
    %v1395 = vmul.f32 %v1390, %v1394
    %v1396 = vpack.c.bf16 %v1395, %v1395
    %s1397 = scalar_lea.vmem [#allocation2], 192
    %v1398 = vld [vmem:[%s1397] sm:$0xff]
    %v1399 = vld [vmem:[%s1397 + $0x8] sm:$0xff]
    %v1400 = vld [vmem:[%s1397 + $0x10] sm:$0xff]
    %v1401 = vld [vmem:[%s1397 + $0x18] sm:$0xff]
    %1402 = vmatprep.subr.bf16.mxu0 %v679
    %1403 = vmatpush1.bf16.msra.mxu0 %v678
    %1404 = vmatprep.subr.bf16.mxu0 %v683
    %1405 = vmatpush1.bf16.msra.mxu0 %v682
    %1406 = vmatprep.subr.bf16.mxu0 %v687
    %1407 = vmatpush1.bf16.msra.mxu0 %v686
    %1408 = vmatprep.subr.bf16.mxu0 %v691
    %1409 = vmatpush1.bf16.msra.mxu0 %v690
    %1410 = vmatprep.subr.bf16.mxu0 %v695
    %1411 = vmatpush1.bf16.msra.mxu0 %v694
    %1412 = vmatprep.subr.bf16.mxu0 %v699
    %1413 = vmatpush1.bf16.msra.mxu0 %v698
    %1414 = vmatprep.subr.bf16.mxu0 %v703
    %1415 = vmatpush1.bf16.msra.mxu0 %v702
    %1416 = vmatprep.subr.bf16.mxu0 %v707
    %1417 = vmatpush1.bf16.msra.mxu0 %v706
    %1418 = vmatprep.subr.bf16.mxu0 0
    %1419 = vmatpush1.bf16.msra.mxu0 0
    %1420 = vmatprep.subr.bf16.mxu0 0
    %1421 = vmatpush1.bf16.msra.mxu0 0
    %1422 = vmatprep.subr.bf16.mxu0 0
    %1423 = vmatpush1.bf16.msra.mxu0 0
    %1424 = vmatprep.subr.bf16.mxu0 0
    %1425 = vmatpush1.bf16.msra.mxu0 0
    %1426 = vmatprep.subr.bf16.mxu0 0
    %1427 = vmatpush1.bf16.msra.mxu0 0
    %1428 = vmatprep.subr.bf16.mxu0 0
    %1429 = vmatpush1.bf16.msra.mxu0 0
    %1430 = vmatprep.subr.bf16.mxu0 0
    %1431 = vmatpush1.bf16.msra.mxu0 0
    %1432 = vmatprep.subr.bf16.mxu0 0
    %1433 = vmatpush1.bf16.msra.mxu0 0
    %1434 = vmatprep.mubr.bf16.mxu0 0
    %1435 = vmatmul.mubr.bf16.gmra.mrb[0].mxu0 %v1396
    %v1436 = vpop.f32.mrb[0].mxu0
    %v1437 = vadd.f32 0.0, %v1436
    %v1438 = vpop.f32.mrb[0].mxu0
    %v1439 = vadd.f32 0.0, %v1438
    %v1440 = vpop.f32.mrb[0].mxu0
    %v1441 = vpop.f32.mrb[0].mxu0
    %1442 = vdwg.mxu0
    %1443 = vmatprep.subr.bf16.mxu0 %v681
    %1444 = vmatpush1.bf16.msra.mxu0 %v680
    %1445 = vmatprep.subr.bf16.mxu0 %v685
    %1446 = vmatpush1.bf16.msra.mxu0 %v684
    %1447 = vmatprep.subr.bf16.mxu0 %v689
    %1448 = vmatpush1.bf16.msra.mxu0 %v688
    %1449 = vmatprep.subr.bf16.mxu0 %v693
    %1450 = vmatpush1.bf16.msra.mxu0 %v692
    %1451 = vmatprep.subr.bf16.mxu0 %v697
    %1452 = vmatpush1.bf16.msra.mxu0 %v696
    %1453 = vmatprep.subr.bf16.mxu0 %v701
    %1454 = vmatpush1.bf16.msra.mxu0 %v700
    %1455 = vmatprep.subr.bf16.mxu0 %v705
    %1456 = vmatpush1.bf16.msra.mxu0 %v704
    %1457 = vmatprep.subr.bf16.mxu0 %v709
    %1458 = vmatpush1.bf16.msra.mxu0 %v708
    %1459 = vmatprep.subr.bf16.mxu0 0
    %1460 = vmatpush1.bf16.msra.mxu0 0
    %1461 = vmatprep.subr.bf16.mxu0 0
    %1462 = vmatpush1.bf16.msra.mxu0 0
    %1463 = vmatprep.subr.bf16.mxu0 0
    %1464 = vmatpush1.bf16.msra.mxu0 0
    %1465 = vmatprep.subr.bf16.mxu0 0
    %1466 = vmatpush1.bf16.msra.mxu0 0
    %1467 = vmatprep.subr.bf16.mxu0 0
    %1468 = vmatpush1.bf16.msra.mxu0 0
    %1469 = vmatprep.subr.bf16.mxu0 0
    %1470 = vmatpush1.bf16.msra.mxu0 0
    %1471 = vmatprep.subr.bf16.mxu0 0
    %1472 = vmatpush1.bf16.msra.mxu0 0
    %1473 = vmatprep.subr.bf16.mxu0 0
    %1474 = vmatpush1.bf16.msra.mxu0 0
    %1475 = vmatprep.mubr.bf16.mxu0 0
    %1476 = vmatmul.mubr.bf16.gmra.mrb[0].mxu0 %v1396
    %v1477 = vpop.f32.mrb[0].mxu0
    %v1478 = vadd.f32 0.0, %v1477
    %v1479 = vpop.f32.mrb[0].mxu0
    %v1480 = vadd.f32 0.0, %v1479
    %v1481 = vpop.f32.mrb[0].mxu0
    %v1482 = vpop.f32.mrb[0].mxu0
    %1483 = vdwg.mxu0
    %v1484 = vadd.f32 %v1398, %v1437
    %v1485 = vadd.f32 %v1399, %v1439
    %v1486 = vadd.f32 %v1400, %v1478
    %v1487 = vadd.f32 %v1401, %v1480
    %v1488 = vmul.f32 %v1484, 0.5
    %v1489 = vtanh.pop %v1488
    %v1490 = vmul.f32 %v1489, 0.5
    %v1491 = vadd.f32 %v1490, 0.5
    %v1492 = vmul.f32 %v1485, 0.5
    %v1493 = vtanh.pop %v1492
    %v1494 = vmul.f32 %v1493, 0.5
    %v1495 = vadd.f32 %v1494, 0.5
    %v1496 = vtanh.pop %v1486
    %v1497 = vmul.f32 %v1487, 0.5
    %v1498 = vtanh.pop %v1497
    %v1499 = vmul.f32 %v1498, 0.5
    %v1500 = vadd.f32 %v1499, 0.5
    %v1501 = vmul.f32 %v1495, %v1393
    %v1502 = vmul.f32 %v1491, %v1496
    %v1503 = vadd.f32 %v1501, %v1502
    %v1504 = vtanh.pop %v1503
    %v1505 = vmul.f32 %v1500, %v1504
    %v1506 = vpack.c.bf16 %v1505, %v1505
    %s1507 = scalar_lea.vmem [#allocation2], 224
    %v1508 = vld [vmem:[%s1507] sm:$0xff]
    %v1509 = vld [vmem:[%s1507 + $0x8] sm:$0xff]
    %v1510 = vld [vmem:[%s1507 + $0x10] sm:$0xff]
    %v1511 = vld [vmem:[%s1507 + $0x18] sm:$0xff]
    %1512 = vmatprep.subr.bf16.mxu0 %v679
    %1513 = vmatpush1.bf16.msra.mxu0 %v678
    %1514 = vmatprep.subr.bf16.mxu0 %v683
    %1515 = vmatpush1.bf16.msra.mxu0 %v682
    %1516 = vmatprep.subr.bf16.mxu0 %v687
    %1517 = vmatpush1.bf16.msra.mxu0 %v686
    %1518 = vmatprep.subr.bf16.mxu0 %v691
    %1519 = vmatpush1.bf16.msra.mxu0 %v690
    %1520 = vmatprep.subr.bf16.mxu0 %v695
    %1521 = vmatpush1.bf16.msra.mxu0 %v694
    %1522 = vmatprep.subr.bf16.mxu0 %v699
    %1523 = vmatpush1.bf16.msra.mxu0 %v698
    %1524 = vmatprep.subr.bf16.mxu0 %v703
    %1525 = vmatpush1.bf16.msra.mxu0 %v702
    %1526 = vmatprep.subr.bf16.mxu0 %v707
    %1527 = vmatpush1.bf16.msra.mxu0 %v706
    %1528 = vmatprep.subr.bf16.mxu0 0
    %1529 = vmatpush1.bf16.msra.mxu0 0
    %1530 = vmatprep.subr.bf16.mxu0 0
    %1531 = vmatpush1.bf16.msra.mxu0 0
    %1532 = vmatprep.subr.bf16.mxu0 0
    %1533 = vmatpush1.bf16.msra.mxu0 0
    %1534 = vmatprep.subr.bf16.mxu0 0
    %1535 = vmatpush1.bf16.msra.mxu0 0
    %1536 = vmatprep.subr.bf16.mxu0 0
    %1537 = vmatpush1.bf16.msra.mxu0 0
    %1538 = vmatprep.subr.bf16.mxu0 0
    %1539 = vmatpush1.bf16.msra.mxu0 0
    %1540 = vmatprep.subr.bf16.mxu0 0
    %1541 = vmatpush1.bf16.msra.mxu0 0
    %1542 = vmatprep.subr.bf16.mxu0 0
    %1543 = vmatpush1.bf16.msra.mxu0 0
    %1544 = vmatprep.mubr.bf16.mxu0 0
    %1545 = vmatmul.mubr.bf16.gmra.mrb[0].mxu0 %v1506
    %v1546 = vpop.f32.mrb[0].mxu0
    %v1547 = vadd.f32 0.0, %v1546
    %v1548 = vpop.f32.mrb[0].mxu0
    %v1549 = vadd.f32 0.0, %v1548
    %v1550 = vpop.f32.mrb[0].mxu0
    %v1551 = vpop.f32.mrb[0].mxu0
    %1552 = vdwg.mxu0
    %1553 = vmatprep.subr.bf16.mxu0 %v681
    %1554 = vmatpush1.bf16.msra.mxu0 %v680
    %1555 = vmatprep.subr.bf16.mxu0 %v685
    %1556 = vmatpush1.bf16.msra.mxu0 %v684
    %1557 = vmatprep.subr.bf16.mxu0 %v689
    %1558 = vmatpush1.bf16.msra.mxu0 %v688
    %1559 = vmatprep.subr.bf16.mxu0 %v693
    %1560 = vmatpush1.bf16.msra.mxu0 %v692
    %1561 = vmatprep.subr.bf16.mxu0 %v697
    %1562 = vmatpush1.bf16.msra.mxu0 %v696
    %1563 = vmatprep.subr.bf16.mxu0 %v701
    %1564 = vmatpush1.bf16.msra.mxu0 %v700
    %1565 = vmatprep.subr.bf16.mxu0 %v705
    %1566 = vmatpush1.bf16.msra.mxu0 %v704
    %1567 = vmatprep.subr.bf16.mxu0 %v709
    %1568 = vmatpush1.bf16.msra.mxu0 %v708
    %1569 = vmatprep.subr.bf16.mxu0 0
    %1570 = vmatpush1.bf16.msra.mxu0 0
    %1571 = vmatprep.subr.bf16.mxu0 0
    %1572 = vmatpush1.bf16.msra.mxu0 0
    %1573 = vmatprep.subr.bf16.mxu0 0
    %1574 = vmatpush1.bf16.msra.mxu0 0
    %1575 = vmatprep.subr.bf16.mxu0 0
    %1576 = vmatpush1.bf16.msra.mxu0 0
    %1577 = vmatprep.subr.bf16.mxu0 0
    %1578 = vmatpush1.bf16.msra.mxu0 0
    %1579 = vmatprep.subr.bf16.mxu0 0
    %1580 = vmatpush1.bf16.msra.mxu0 0
    %1581 = vmatprep.subr.bf16.mxu0 0
    %1582 = vmatpush1.bf16.msra.mxu0 0
    %1583 = vmatprep.subr.bf16.mxu0 0
    %1584 = vmatpush1.bf16.msra.mxu0 0
    %1585 = vmatprep.mubr.bf16.mxu0 0
    %1586 = vmatmul.mubr.bf16.gmra.mrb[0].mxu0 %v1506
    %v1587 = vpop.f32.mrb[0].mxu0
    %v1588 = vadd.f32 0.0, %v1587
    %v1589 = vpop.f32.mrb[0].mxu0
    %v1590 = vadd.f32 0.0, %v1589
    %v1591 = vpop.f32.mrb[0].mxu0
    %v1592 = vpop.f32.mrb[0].mxu0
    %1593 = vdwg.mxu0
    %v1594 = vadd.f32 %v1508, %v1547
    %v1595 = vadd.f32 %v1509, %v1549
    %v1596 = vadd.f32 %v1510, %v1588
    %v1597 = vadd.f32 %v1511, %v1590
    %v1598 = vmul.f32 %v1594, 0.5
    %v1599 = vtanh.pop %v1598
    %v1600 = vmul.f32 %v1599, 0.5
    %v1601 = vadd.f32 %v1600, 0.5
    %v1602 = vmul.f32 %v1595, 0.5
    %v1603 = vtanh.pop %v1602
    %v1604 = vmul.f32 %v1603, 0.5
    %v1605 = vadd.f32 %v1604, 0.5
    %v1606 = vtanh.pop %v1596
    %v1607 = vmul.f32 %v1597, 0.5
    %v1608 = vtanh.pop %v1607
    %v1609 = vmul.f32 %v1608, 0.5
    %v1610 = vadd.f32 %v1609, 0.5
    %v1611 = vmul.f32 %v1605, %v1503
    %v1612 = vmul.f32 %v1601, %v1606
    %v1613 = vadd.f32 %v1611, %v1612
    %v1614 = vtanh.pop %v1613
    %v1615 = vmul.f32 %v1610, %v1614
    %v1616 = vpack.c.bf16 %v1615, %v1615
    %1617 = vst [vmem:[#allocation3] sm:$0xf] %v1616
    %1618 = vst [vmem:[#allocation4] sm:$0xff] %v1613
    // Predicated region
    $region66: #{tpu_custom_call.1} parent=1 // pred_check
      %p1619 = pneg %p114
    $region67: #{tpu_custom_call.1} parent=1 // pred_check_branch
      %1621 = sbr.rel (%p1619) target = $region69
    $region68: #{tpu_custom_call.1} parent=1 // pred_region
      %v1622 = vld [vmem:[#allocation8] sm:$0xf]
      %v1623 = vld [vmem:[#allocation13] sm:$0xff]
      %v1624 = vld [vmem:[#allocation13 + $0x8] sm:$0xff]
      %v1625 = vld [vmem:[#allocation13 + $0x10] sm:$0xff]
      %v1626 = vld [vmem:[#allocation13 + $0x18] sm:$0xff]
      %v1627 = vld [vmem:[#allocation13 + $0x20] sm:$0xff]
      %v1628 = vld [vmem:[#allocation13 + $0x28] sm:$0xff]
      %v1629 = vld [vmem:[#allocation13 + $0x30] sm:$0xff]
      %v1630 = vld [vmem:[#allocation13 + $0x38] sm:$0xff]
      %v1631 = vld [vmem:[#allocation13 + $0x40] sm:$0xff]
      %v1632 = vld [vmem:[#allocation13 + $0x48] sm:$0xff]
      %v1633 = vld [vmem:[#allocation13 + $0x50] sm:$0xff]
      %v1634 = vld [vmem:[#allocation13 + $0x58] sm:$0xff]
      %v1635 = vld [vmem:[#allocation13 + $0x60] sm:$0xff]
      %v1636 = vld [vmem:[#allocation13 + $0x68] sm:$0xff]
      %v1637 = vld [vmem:[#allocation13 + $0x70] sm:$0xff]
      %v1638 = vld [vmem:[#allocation13 + $0x78] sm:$0xff]
      %v1639 = vld [vmem:[#allocation13 + $0x80] sm:$0xff]
      %v1640 = vld [vmem:[#allocation13 + $0x88] sm:$0xff]
      %v1641 = vld [vmem:[#allocation13 + $0x90] sm:$0xff]
      %v1642 = vld [vmem:[#allocation13 + $0x98] sm:$0xff]
      %v1643 = vld [vmem:[#allocation13 + $0xa0] sm:$0xff]
      %v1644 = vld [vmem:[#allocation13 + $0xa8] sm:$0xff]
      %v1645 = vld [vmem:[#allocation13 + $0xb0] sm:$0xff]
      %v1646 = vld [vmem:[#allocation13 + $0xb8] sm:$0xff]
      %v1647 = vld [vmem:[#allocation13 + $0xc0] sm:$0xff]
      %v1648 = vld [vmem:[#allocation13 + $0xc8] sm:$0xff]
      %v1649 = vld [vmem:[#allocation13 + $0xd0] sm:$0xff]
      %v1650 = vld [vmem:[#allocation13 + $0xd8] sm:$0xff]
      %v1651 = vld [vmem:[#allocation13 + $0xe0] sm:$0xff]
      %v1652 = vld [vmem:[#allocation13 + $0xe8] sm:$0xff]
      %v1653 = vld [vmem:[#allocation13 + $0xf0] sm:$0xff]
      %v1654 = vld [vmem:[#allocation13 + $0xf8] sm:$0xff]
      %v1655 = vld [vmem:[%s6] sm:$0xf]
      %v1657 = vlaneseq
      %v1658 = vshrl.u32 %v1657, 7
      %v1659 = vsub.s32 0, %v1658
      %v1660 = vrot.slane %v1655, %v1659
      %v1661 = vlaneseq
      %v1662 = vshrl.u32 %v1661, 7
      %v1663 = vsub.s32 2, %v1662
      %v1664 = vrot.slane %v1655, %v1663
      %v1665 = vlaneseq
      %v1666 = vshrl.u32 %v1665, 7
      %v1667 = vsub.s32 3, %v1666
      %v1668 = vrot.slane %v1655, %v1667
      %v1704 = vunpack.c.l.b16 %v1623
      %v1705 = vunpack.c.h.b16 %v1623
      %v1706 = vunpack.c.l.b16 %v1624
      %v1707 = vunpack.c.h.b16 %v1624
      %v1708 = vunpack.c.l.b16 %v1625
      %v1709 = vunpack.c.h.b16 %v1625
      %v1710 = vunpack.c.l.b16 %v1626
      %v1711 = vunpack.c.h.b16 %v1626
      %v1712 = vunpack.c.l.b16 %v1627
      %v1713 = vunpack.c.h.b16 %v1627
      %v1714 = vunpack.c.l.b16 %v1628
      %v1715 = vunpack.c.h.b16 %v1628
      %v1716 = vunpack.c.l.b16 %v1629
      %v1717 = vunpack.c.h.b16 %v1629
      %v1718 = vunpack.c.l.b16 %v1630
      %v1719 = vunpack.c.h.b16 %v1630
      %v1720 = vunpack.c.l.b16 %v1631
      %v1721 = vunpack.c.h.b16 %v1631
      %v1722 = vunpack.c.l.b16 %v1632
      %v1723 = vunpack.c.h.b16 %v1632
      %v1724 = vunpack.c.l.b16 %v1633
      %v1725 = vunpack.c.h.b16 %v1633
      %v1726 = vunpack.c.l.b16 %v1634
      %v1727 = vunpack.c.h.b16 %v1634
      %v1728 = vunpack.c.l.b16 %v1635
      %v1729 = vunpack.c.h.b16 %v1635
      %v1730 = vunpack.c.l.b16 %v1636
      %v1731 = vunpack.c.h.b16 %v1636
      %v1732 = vunpack.c.l.b16 %v1637
      %v1733 = vunpack.c.h.b16 %v1637
      %v1734 = vunpack.c.l.b16 %v1638
      %v1735 = vunpack.c.h.b16 %v1638
      %v1736 = vunpack.c.l.b16 %v1639
      %v1737 = vunpack.c.h.b16 %v1639
      %v1738 = vunpack.c.l.b16 %v1640
      %v1739 = vunpack.c.h.b16 %v1640
      %v1740 = vunpack.c.l.b16 %v1641
      %v1741 = vunpack.c.h.b16 %v1641
      %v1742 = vunpack.c.l.b16 %v1642
      %v1743 = vunpack.c.h.b16 %v1642
      %v1744 = vunpack.c.l.b16 %v1643
      %v1745 = vunpack.c.h.b16 %v1643
      %v1746 = vunpack.c.l.b16 %v1644
      %v1747 = vunpack.c.h.b16 %v1644
      %v1748 = vunpack.c.l.b16 %v1645
      %v1749 = vunpack.c.h.b16 %v1645
      %v1750 = vunpack.c.l.b16 %v1646
      %v1751 = vunpack.c.h.b16 %v1646
      %v1752 = vunpack.c.l.b16 %v1647
      %v1753 = vunpack.c.h.b16 %v1647
      %v1754 = vunpack.c.l.b16 %v1648
      %v1755 = vunpack.c.h.b16 %v1648
      %v1756 = vunpack.c.l.b16 %v1649
      %v1757 = vunpack.c.h.b16 %v1649
      %v1758 = vunpack.c.l.b16 %v1650
      %v1759 = vunpack.c.h.b16 %v1650
      %v1760 = vunpack.c.l.b16 %v1651
      %v1761 = vunpack.c.h.b16 %v1651
      %v1762 = vunpack.c.l.b16 %v1652
      %v1763 = vunpack.c.h.b16 %v1652
      %v1764 = vunpack.c.l.b16 %v1653
      %v1765 = vunpack.c.h.b16 %v1653
      %v1766 = vunpack.c.l.b16 %v1654
      %v1767 = vunpack.c.h.b16 %v1654
      %v1768 = vpack.c.b16 %v1708, %v1704
      %v1769 = vpack.c.b16 %v1709, %v1705
      %v1770 = vpack.c.b16 %v1710, %v1706
      %v1771 = vpack.c.b16 %v1711, %v1707
      %v1772 = vpack.c.b16 %v1716, %v1712
      %v1773 = vpack.c.b16 %v1717, %v1713
      %v1774 = vpack.c.b16 %v1718, %v1714
      %v1775 = vpack.c.b16 %v1719, %v1715
      %v1776 = vpack.c.b16 %v1724, %v1720
      %v1777 = vpack.c.b16 %v1725, %v1721
      %v1778 = vpack.c.b16 %v1726, %v1722
      %v1779 = vpack.c.b16 %v1727, %v1723
      %v1780 = vpack.c.b16 %v1732, %v1728
      %v1781 = vpack.c.b16 %v1733, %v1729
      %v1782 = vpack.c.b16 %v1734, %v1730
      %v1783 = vpack.c.b16 %v1735, %v1731
      %v1784 = vpack.c.b16 %v1740, %v1736
      %v1785 = vpack.c.b16 %v1741, %v1737
      %v1786 = vpack.c.b16 %v1742, %v1738
      %v1787 = vpack.c.b16 %v1743, %v1739
      %v1788 = vpack.c.b16 %v1748, %v1744
      %v1789 = vpack.c.b16 %v1749, %v1745
      %v1790 = vpack.c.b16 %v1750, %v1746
      %v1791 = vpack.c.b16 %v1751, %v1747
      %v1792 = vpack.c.b16 %v1756, %v1752
      %v1793 = vpack.c.b16 %v1757, %v1753
      %v1794 = vpack.c.b16 %v1758, %v1754
      %v1795 = vpack.c.b16 %v1759, %v1755
      %v1796 = vpack.c.b16 %v1764, %v1760
      %v1797 = vpack.c.b16 %v1765, %v1761
      %v1798 = vpack.c.b16 %v1766, %v1762
      %v1799 = vpack.c.b16 %v1767, %v1763
      %1832 = vmatprep.subr.bf16.mxu0 %v1769
      %1833 = vmatpush1.bf16.msra.mxu0 %v1768
      %1834 = vmatprep.subr.bf16.mxu0 %v1773
      %1835 = vmatpush1.bf16.msra.mxu0 %v1772
      %1836 = vmatprep.subr.bf16.mxu0 %v1777
      %1837 = vmatpush1.bf16.msra.mxu0 %v1776
      %1838 = vmatprep.subr.bf16.mxu0 %v1781
      %1839 = vmatpush1.bf16.msra.mxu0 %v1780
      %1840 = vmatprep.subr.bf16.mxu0 %v1785
      %1841 = vmatpush1.bf16.msra.mxu0 %v1784
      %1842 = vmatprep.subr.bf16.mxu0 %v1789
      %1843 = vmatpush1.bf16.msra.mxu0 %v1788
      %1844 = vmatprep.subr.bf16.mxu0 %v1793
      %1845 = vmatpush1.bf16.msra.mxu0 %v1792
      %1846 = vmatprep.subr.bf16.mxu0 %v1797
      %1847 = vmatpush1.bf16.msra.mxu0 %v1796
      %1848 = vmatprep.subr.bf16.mxu0 0
      %1849 = vmatpush1.bf16.msra.mxu0 0
      %1850 = vmatprep.subr.bf16.mxu0 0
      %1851 = vmatpush1.bf16.msra.mxu0 0
      %1852 = vmatprep.subr.bf16.mxu0 0
      %1853 = vmatpush1.bf16.msra.mxu0 0
      %1854 = vmatprep.subr.bf16.mxu0 0
      %1855 = vmatpush1.bf16.msra.mxu0 0
      %1856 = vmatprep.subr.bf16.mxu0 0
      %1857 = vmatpush1.bf16.msra.mxu0 0
      %1858 = vmatprep.subr.bf16.mxu0 0
      %1859 = vmatpush1.bf16.msra.mxu0 0
      %1860 = vmatprep.subr.bf16.mxu0 0
      %1861 = vmatpush1.bf16.msra.mxu0 0
      %1862 = vmatprep.subr.bf16.mxu0 0
      %1863 = vmatpush1.bf16.msra.mxu0 0
      %1864 = vmatprep.mubr.bf16.mxu0 0
      %1865 = vmatmul.mubr.bf16.gmra.mrb[0].mxu0 %v1622
      %v1866 = vpop.f32.mrb[0].mxu0
      %v1867 = vadd.f32 %v1660, %v1866
      %v1868 = vpop.f32.mrb[0].mxu0
      %v1869 = vpop.f32.mrb[0].mxu0
      %v1870 = vpop.f32.mrb[0].mxu0
      %1871 = vdwg.mxu0
      %1872 = vmatprep.subr.bf16.mxu0 %v1771
      %1873 = vmatpush1.bf16.msra.mxu0 %v1770
      %1874 = vmatprep.subr.bf16.mxu0 %v1775
      %1875 = vmatpush1.bf16.msra.mxu0 %v1774
      %1876 = vmatprep.subr.bf16.mxu0 %v1779
      %1877 = vmatpush1.bf16.msra.mxu0 %v1778
      %1878 = vmatprep.subr.bf16.mxu0 %v1783
      %1879 = vmatpush1.bf16.msra.mxu0 %v1782
      %1880 = vmatprep.subr.bf16.mxu0 %v1787
      %1881 = vmatpush1.bf16.msra.mxu0 %v1786
      %1882 = vmatprep.subr.bf16.mxu0 %v1791
      %1883 = vmatpush1.bf16.msra.mxu0 %v1790
      %1884 = vmatprep.subr.bf16.mxu0 %v1795
      %1885 = vmatpush1.bf16.msra.mxu0 %v1794
      %1886 = vmatprep.subr.bf16.mxu0 %v1799
      %1887 = vmatpush1.bf16.msra.mxu0 %v1798
      %1888 = vmatprep.subr.bf16.mxu0 0
      %1889 = vmatpush1.bf16.msra.mxu0 0
      %1890 = vmatprep.subr.bf16.mxu0 0
      %1891 = vmatpush1.bf16.msra.mxu0 0
      %1892 = vmatprep.subr.bf16.mxu0 0
      %1893 = vmatpush1.bf16.msra.mxu0 0
      %1894 = vmatprep.subr.bf16.mxu0 0
      %1895 = vmatpush1.bf16.msra.mxu0 0
      %1896 = vmatprep.subr.bf16.mxu0 0
      %1897 = vmatpush1.bf16.msra.mxu0 0
      %1898 = vmatprep.subr.bf16.mxu0 0
      %1899 = vmatpush1.bf16.msra.mxu0 0
      %1900 = vmatprep.subr.bf16.mxu0 0
      %1901 = vmatpush1.bf16.msra.mxu0 0
      %1902 = vmatprep.subr.bf16.mxu0 0
      %1903 = vmatpush1.bf16.msra.mxu0 0
      %1904 = vmatprep.mubr.bf16.mxu0 0
      %1905 = vmatmul.mubr.bf16.gmra.mrb[0].mxu0 %v1622
      %v1906 = vpop.f32.mrb[0].mxu0
      %v1907 = vadd.f32 %v1664, %v1906
      %v1908 = vpop.f32.mrb[0].mxu0
      %v1909 = vadd.f32 %v1668, %v1908
      %v1910 = vpop.f32.mrb[0].mxu0
      %v1911 = vpop.f32.mrb[0].mxu0
      %1912 = vdwg.mxu0
      %v1913 = vmul.f32 %v1867, 0.5
      %v1914 = vtanh.pop %v1913
      %v1915 = vmul.f32 %v1914, 0.5
      %v1916 = vadd.f32 %v1915, 0.5
      %v1917 = vtanh.pop %v1907
      %v1918 = vmul.f32 %v1909, 0.5
      %v1919 = vtanh.pop %v1918
      %v1920 = vmul.f32 %v1919, 0.5
      %v1921 = vadd.f32 %v1920, 0.5
      %v1922 = vmul.f32 %v1916, %v1917
      %v1923 = vtanh.pop %v1922
      %v1924 = vmul.f32 %v1921, %v1923
      %v1925 = vpack.c.bf16 %v1924, %v1924
      %v1926 = vld [vmem:[#allocation14] sm:$0xf]
      %v1927 = vld [vmem:[#allocation14 + $0x4] sm:$0xf]
      %v1928 = vld [vmem:[#allocation14 + $0x8] sm:$0xf]
      %v1929 = vld [vmem:[#allocation14 + $0xc] sm:$0xf]
      %v1930 = vld [vmem:[#allocation14 + $0x10] sm:$0xf]
      %v1931 = vld [vmem:[#allocation14 + $0x14] sm:$0xf]
      %v1932 = vld [vmem:[#allocation14 + $0x18] sm:$0xf]
      %v1933 = vld [vmem:[#allocation14 + $0x1c] sm:$0xf]
      %v1934 = vld [vmem:[#allocation14 + $0x20] sm:$0xf]
      %v1935 = vld [vmem:[#allocation14 + $0x24] sm:$0xf]
      %v1936 = vld [vmem:[#allocation14 + $0x28] sm:$0xf]
      %v1937 = vld [vmem:[#allocation14 + $0x2c] sm:$0xf]
      %v1938 = vld [vmem:[#allocation14 + $0x30] sm:$0xf]
      %v1939 = vld [vmem:[#allocation14 + $0x34] sm:$0xf]
      %v1940 = vld [vmem:[#allocation14 + $0x38] sm:$0xf]
      %v1941 = vld [vmem:[#allocation14 + $0x3c] sm:$0xf]
      %v1942 = vld [vmem:[#allocation14 + $0x40] sm:$0xf]
      %v1943 = vld [vmem:[#allocation14 + $0x44] sm:$0xf]
      %v1944 = vld [vmem:[#allocation14 + $0x48] sm:$0xf]
      %v1945 = vld [vmem:[#allocation14 + $0x4c] sm:$0xf]
      %v1946 = vld [vmem:[#allocation14 + $0x50] sm:$0xf]
      %v1947 = vld [vmem:[#allocation14 + $0x54] sm:$0xf]
      %v1948 = vld [vmem:[#allocation14 + $0x58] sm:$0xf]
      %v1949 = vld [vmem:[#allocation14 + $0x5c] sm:$0xf]
      %v1950 = vld [vmem:[#allocation14 + $0x60] sm:$0xf]
      %v1951 = vld [vmem:[#allocation14 + $0x64] sm:$0xf]
      %v1952 = vld [vmem:[#allocation14 + $0x68] sm:$0xf]
      %v1953 = vld [vmem:[#allocation14 + $0x6c] sm:$0xf]
      %v1954 = vld [vmem:[#allocation14 + $0x70] sm:$0xf]
      %v1955 = vld [vmem:[#allocation14 + $0x74] sm:$0xf]
      %v1956 = vld [vmem:[#allocation14 + $0x78] sm:$0xf]
      %v1957 = vld [vmem:[#allocation14 + $0x7c] sm:$0xf]
      %v1974 = vunpack.c.l.b16 %v1942
      %v1975 = vunpack.c.l.b16 %v1943
      %v1976 = vunpack.c.l.b16 %v1944
      %v1977 = vunpack.c.l.b16 %v1945
      %v1978 = vunpack.c.l.b16 %v1946
      %v1979 = vunpack.c.l.b16 %v1947
      %v1980 = vunpack.c.l.b16 %v1948
      %v1981 = vunpack.c.l.b16 %v1949
      %v1982 = vunpack.c.l.b16 %v1950
      %v1983 = vunpack.c.l.b16 %v1951
      %v1984 = vunpack.c.l.b16 %v1952
      %v1985 = vunpack.c.l.b16 %v1953
      %v1986 = vunpack.c.l.b16 %v1954
      %v1987 = vunpack.c.l.b16 %v1955
      %v1988 = vunpack.c.l.b16 %v1956
      %v1989 = vunpack.c.l.b16 %v1957
      %v1990 = vpack.c.b16 %v1975, %v1974
      %v1991 = vpack.c.b16 %v1977, %v1976
      %v1992 = vpack.c.b16 %v1979, %v1978
      %v1993 = vpack.c.b16 %v1981, %v1980
      %v1994 = vpack.c.b16 %v1983, %v1982
      %v1995 = vpack.c.b16 %v1985, %v1984
      %v1996 = vpack.c.b16 %v1987, %v1986
      %v1997 = vpack.c.b16 %v1989, %v1988
      %2006 = vmatprep.subr.bf16.mxu0 0
      %2007 = vmatpush1.bf16.msra.mxu0 %v1990
      %2008 = vmatprep.subr.bf16.mxu0 0
      %2009 = vmatpush1.bf16.msra.mxu0 %v1991
      %2010 = vmatprep.subr.bf16.mxu0 0
      %2011 = vmatpush1.bf16.msra.mxu0 %v1992
      %2012 = vmatprep.subr.bf16.mxu0 0
      %2013 = vmatpush1.bf16.msra.mxu0 %v1993
      %2014 = vmatprep.subr.bf16.mxu0 0
      %2015 = vmatpush1.bf16.msra.mxu0 %v1994
      %2016 = vmatprep.subr.bf16.mxu0 0
      %2017 = vmatpush1.bf16.msra.mxu0 %v1995
      %2018 = vmatprep.subr.bf16.mxu0 0
      %2019 = vmatpush1.bf16.msra.mxu0 %v1996
      %2020 = vmatprep.subr.bf16.mxu0 0
      %2021 = vmatpush1.bf16.msra.mxu0 %v1997
      %2022 = vmatprep.subr.bf16.mxu0 0
      %2023 = vmatpush1.bf16.msra.mxu0 0
      %2024 = vmatprep.subr.bf16.mxu0 0
      %2025 = vmatpush1.bf16.msra.mxu0 0
      %2026 = vmatprep.subr.bf16.mxu0 0
      %2027 = vmatpush1.bf16.msra.mxu0 0
      %2028 = vmatprep.subr.bf16.mxu0 0
      %2029 = vmatpush1.bf16.msra.mxu0 0
      %2030 = vmatprep.subr.bf16.mxu0 0
      %2031 = vmatpush1.bf16.msra.mxu0 0
      %2032 = vmatprep.subr.bf16.mxu0 0
      %2033 = vmatpush1.bf16.msra.mxu0 0
      %2034 = vmatprep.subr.bf16.mxu0 0
      %2035 = vmatpush1.bf16.msra.mxu0 0
      %2036 = vmatprep.subr.bf16.mxu0 0
      %2037 = vmatpush1.bf16.msra.mxu0 0
      %2038 = vmatprep.mubr.bf16.mxu0 0
      %2039 = vmatmul.mubr.bf16.gmra.mrb[0].mxu0 %v1925
      %v2040 = vpop.f32.mrb[0].mxu0
      %v2041 = vadd.f32 0.0, %v2040
      %v2042 = vpop.f32.mrb[0].mxu0
      %v2043 = vpop.f32.mrb[0].mxu0
      %v2044 = vpop.f32.mrb[0].mxu0
      %2045 = vdwg.mxu0
      %v2062 = vunpack.c.l.b16 %v1926
      %v2063 = vunpack.c.l.b16 %v1927
      %v2064 = vunpack.c.l.b16 %v1928
      %v2065 = vunpack.c.l.b16 %v1929
      %v2066 = vunpack.c.l.b16 %v1930
      %v2067 = vunpack.c.l.b16 %v1931
      %v2068 = vunpack.c.l.b16 %v1932
      %v2069 = vunpack.c.l.b16 %v1933
      %v2070 = vunpack.c.l.b16 %v1934
      %v2071 = vunpack.c.l.b16 %v1935
      %v2072 = vunpack.c.l.b16 %v1936
      %v2073 = vunpack.c.l.b16 %v1937
      %v2074 = vunpack.c.l.b16 %v1938
      %v2075 = vunpack.c.l.b16 %v1939
      %v2076 = vunpack.c.l.b16 %v1940
      %v2077 = vunpack.c.l.b16 %v1941
      %v2078 = vpack.c.b16 %v2063, %v2062
      %v2079 = vpack.c.b16 %v2065, %v2064
      %v2080 = vpack.c.b16 %v2067, %v2066
      %v2081 = vpack.c.b16 %v2069, %v2068
      %v2082 = vpack.c.b16 %v2071, %v2070
      %v2083 = vpack.c.b16 %v2073, %v2072
      %v2084 = vpack.c.b16 %v2075, %v2074
      %v2085 = vpack.c.b16 %v2077, %v2076
      %2094 = vmatprep.subr.bf16.mxu0 0
      %2095 = vmatpush1.bf16.msra.mxu0 %v2078
      %2096 = vmatprep.subr.bf16.mxu0 0
      %2097 = vmatpush1.bf16.msra.mxu0 %v2079
      %2098 = vmatprep.subr.bf16.mxu0 0
      %2099 = vmatpush1.bf16.msra.mxu0 %v2080
      %2100 = vmatprep.subr.bf16.mxu0 0
      %2101 = vmatpush1.bf16.msra.mxu0 %v2081
      %2102 = vmatprep.subr.bf16.mxu0 0
      %2103 = vmatpush1.bf16.msra.mxu0 %v2082
      %2104 = vmatprep.subr.bf16.mxu0 0
      %2105 = vmatpush1.bf16.msra.mxu0 %v2083
      %2106 = vmatprep.subr.bf16.mxu0 0
      %2107 = vmatpush1.bf16.msra.mxu0 %v2084
      %2108 = vmatprep.subr.bf16.mxu0 0
      %2109 = vmatpush1.bf16.msra.mxu0 %v2085
      %2110 = vmatprep.subr.bf16.mxu0 0
      %2111 = vmatpush1.bf16.msra.mxu0 0
      %2112 = vmatprep.subr.bf16.mxu0 0
      %2113 = vmatpush1.bf16.msra.mxu0 0
      %2114 = vmatprep.subr.bf16.mxu0 0
      %2115 = vmatpush1.bf16.msra.mxu0 0
      %2116 = vmatprep.subr.bf16.mxu0 0
      %2117 = vmatpush1.bf16.msra.mxu0 0
      %2118 = vmatprep.subr.bf16.mxu0 0
      %2119 = vmatpush1.bf16.msra.mxu0 0
      %2120 = vmatprep.subr.bf16.mxu0 0
      %2121 = vmatpush1.bf16.msra.mxu0 0
      %2122 = vmatprep.subr.bf16.mxu0 0
      %2123 = vmatpush1.bf16.msra.mxu0 0
      %2124 = vmatprep.subr.bf16.mxu0 0
      %2125 = vmatpush1.bf16.msra.mxu0 0
      %2126 = vmatprep.mubr.bf16.mxu0 0
      %2127 = vmatmul.mubr.bf16.gmra.mrb[0].mxu0 %v1616
      %v2128 = vpop.f32.mrb[0].mxu0
      %v2129 = vadd.f32 %v2041, %v2128
      %v2130 = vpop.f32.mrb[0].mxu0
      %v2131 = vpop.f32.mrb[0].mxu0
      %v2132 = vpop.f32.mrb[0].mxu0
      %2133 = vdwg.mxu0
      %v2134 = vld [vmem:[%s8] sm:$0x1]
      %v2136 = vlaneseq
      %v2137 = vshrl.u32 %v2136, 7
      %v2138 = vsub.s32 0, %v2137
      %v2139 = vrot.slane %v2134, %v2138
      %v2141 = vadd.f32 %v2129, %v2139
      %2142 = vst [vmem:[#allocation16] sm:$0xff] %v2141
    $region69: #{tpu_custom_call.1} parent=1 // pred_fallthru
      _
    // Predicated region
    $region70: #{tpu_custom_call.1} parent=1 // pred_check
      _
    $region71: #{tpu_custom_call.1} parent=1 // pred_check_branch
      %2144 = sbr.rel (0) target = $region73
    $region72: #{tpu_custom_call.1} parent=1 // pred_region
      %s2146 = ssub.s32 128, 128
      %2147 = vsyncadd [#allocation7], %s2146
      %s2149 = sshll.u32 [#allocation16], 4
      %s2150 = int_to_ptr.vmem [resolvable:$true] %s2149
      %2152 = dma.vmem_to_hbm [thread:$0]  %s2150, 128, %s9, [#allocation7]
    $region73: #{tpu_custom_call.1} parent=1 // pred_fallthru
      _
    // Predicated region
    $region74: #{tpu_custom_call.1} parent=1 // pred_check
      _
    $region75: #{tpu_custom_call.1} parent=1 // pred_check_branch
      %2154 = sbr.rel (0) target = $region77
    $region76: #{tpu_custom_call.1} parent=1 // pred_region
      %2155 = dma.done [#allocation7], 128
    $region77: #{tpu_custom_call.1} parent=1 // pred_fallthru
      _
    %2156 = vsyncpa [#allocation6], 1
    %2157 = vsyncpa [#allocation9], 1
    %2158 = vsyncpa [#allocation12], 1
    %2159 = vsyncpa [#allocation15], 1
    %2160 = vsyncpa [#allocation7], 1

</llo_original>
